<compile_context>
chip_gen: v7x
topology: tpu7x:2x2x1
jax: 0.10.0
libtpu: 0.0.40
codegen_flags: <defaults>
</compile_context>

<pallas_src>
import jax
import jax.numpy as jnp
from jax.experimental import pallas as pl
from jax.experimental.pallas import tpu as pltpu

IN_DIM = 6   # nn.LSTM(6, ...)
HID = 8      # hidden size


def _lstm_head_kernel(x_ref,          # [T*B, IN]  time-major, flattened
                      wih0_ref,       # [IN, 4H]   gate cols in (i,f,o,g) order
                      whh0_ref,       # [H, 4H]
                      b0_ref,         # [1, 4H]    bias_ih_l0 + bias_hh_l0
                      w1_ref,         # [2H, 4H]   stacked [wih1.T; whh1.T]
                      b1_ref,         # [1, 4H]    bias_ih_l1 + bias_hh_l1
                      wl_ref,         # [H, 1]
                      bl_ref,         # [1, 1]
                      out_ref):       # [B, 1]
    """Full forward pass of _MyModel for one (small) batch, all in VMEM."""
    H = HID
    B = out_ref.shape[0]
    T = x_ref.shape[0] // B

    whh0 = whh0_ref[...]
    w1 = w1_ref[...]

    # Hoisted layer-0 input projection: a single [T*B, IN] x [IN, 4H] MXU op
    # with the bias folded in once, instead of T tiny matmuls inside the loop.
    xp = (jnp.dot(x_ref[...], wih0_ref[...], preferred_element_type=jnp.float32)
          + b0_ref[...])                                   # [T*B, 4H]

    # Broadcast the layer-1 bias to [B, 4H] once (JAX does not CSE
    # broadcast_in_dim inside the unrolled loop).
    b1 = jnp.broadcast_to(b1_ref[...], (B, 4 * H))

    def cell(gates, c):
        # Gate column order is (i, f, o, g): one sigmoid over the first 3H
        # lanes and one tanh over the last H lanes per cell.
        sg = jax.nn.sigmoid(gates[:, :3 * H])
        i = sg[:, 0:H]
        f = sg[:, H:2 * H]
        o = sg[:, 2 * H:3 * H]
        g = jnp.tanh(gates[:, 3 * H:])
        c_new = f * c + i * g
        h_new = o * jnp.tanh(c_new)
        return h_new, c_new

    zeros = jnp.zeros((B, H), dtype=jnp.float32)
    h0, c0, h1, c1 = zeros, zeros, zeros, zeros

    # T is a trace-time constant: a plain Python loop fully unrolls the
    # recurrence (equivalent to lax.fori_loop(..., unroll=True)) while keeping
    # every slice index static, so adjacent steps' MXU pops / EUP pushes /
    # VPU gate math can interleave.
    for t in range(T):
        # layer 0: only the recurrent [B,H]x[H,4H] matmul remains in-loop.
        g0 = xp[t * B:(t + 1) * B, :] + jnp.dot(
            h0, whh0, preferred_element_type=jnp.float32)
        h0, c0 = cell(g0, c0)

        # layer 1: single fused [B,2H]x[2H,4H] matmul.
        # nn.LSTM's dropout=0.5 between layers is training-only; the
        # inference forward is identity, so nothing is applied here.
        hcat = jnp.concatenate([h0, h1], axis=1)           # [B, 2H]
        g1 = jnp.dot(hcat, w1, preferred_element_type=jnp.float32) + b1
        h1, c1 = cell(g1, c1)

    # output[:, -1, :] == last-timestep hidden of layer 1; Flatten is a no-op
    # on [B, H]; then ReLU and Linear(8 -> 1).
    feat = jnp.maximum(h1, 0.0)
    out = jnp.dot(feat, wl_ref[...], preferred_element_type=jnp.float32) + bl_ref[...]
    out_ref[...] = out.astype(out_ref.dtype)


def my_model_forward(x, params):
    """x: [B, T, IN] float32 (batch_first, like PyTorch). Returns [B, 1]."""
    B, T, _ = x.shape
    H = HID
    (wih0, whh0, bih0, bhh0,
     wih1, whh1, bih1, bhh1,
     wl, bl) = params

    # Column permutation: PyTorch gate order (i, f, g, o) -> (i, f, o, g) so
    # all three sigmoid gates are contiguous lanes in the kernel.
    perm = jnp.concatenate([
        jnp.arange(0, H), jnp.arange(H, 2 * H),
        jnp.arange(3 * H, 4 * H), jnp.arange(2 * H, 3 * H)])

    # Time-major, flattened: [B, T, IN] -> [T, B, IN] -> [T*B, IN].
    x_tm = jnp.transpose(x, (1, 0, 2)).astype(jnp.float32).reshape(T * B, IN_DIM)

    wih0_p = wih0.T[:, perm]                                  # [IN, 4H]
    whh0_p = whh0.T[:, perm]                                  # [H, 4H]
    b0_p = (bih0 + bhh0)[perm].reshape(1, 4 * H)              # [1, 4H]
    w1_p = jnp.concatenate([wih1.T, whh1.T], axis=0)[:, perm]  # [2H, 4H]
    b1_p = (bih1 + bhh1)[perm].reshape(1, 4 * H)              # [1, 4H]

    args = (x_tm, wih0_p, whh0_p, b0_p, w1_p, b1_p,
            wl.T, bl.reshape(1, 1))

    # Advisory cost hint so XLA schedules surrounding ops around this
    # latency-bound kernel instead of serializing on it.
    flops = (2 * T * B * IN_DIM * 4 * H        # hoisted input projection
             + T * 2 * B * H * 4 * H           # per-step recurrent matmul (L0)
             + T * 2 * B * 2 * H * 4 * H       # per-step fused matmul (L1)
             + 2 * B * H)                      # final linear
    transc = T * B * 10 * H                    # sigmoid/tanh per cell per step
    nbytes = 4 * (x_tm.size + sum(int(a.size) for a in args[1:]) + B)
    cost = pl.CostEstimate(flops=flops, transcendentals=transc,
                           bytes_accessed=nbytes)

    vmem = pl.BlockSpec(memory_space=pltpu.MemorySpace.VMEM)
    return pl.pallas_call(
        _lstm_head_kernel,
        out_shape=jax.ShapeDtypeStruct((B, 1), jnp.float32),
        in_specs=[vmem] * len(args),
        out_specs=vmem,
        cost_estimate=cost,
    )(*args)


def init_params(key):
    """Deterministic init matching PyTorch LSTM/Linear parameter shapes."""
    keys = jax.random.split(key, 10)
    k = 1.0 / jnp.sqrt(jnp.float32(HID))

    def u(kk, shape):
        return jax.random.uniform(kk, shape, jnp.float32, -k, k)

    return (
        u(keys[0], (4 * HID, IN_DIM)),   # weight_ih_l0
        u(keys[1], (4 * HID, HID)),      # weight_hh_l0
        u(keys[2], (4 * HID,)),          # bias_ih_l0
        u(keys[3], (4 * HID,)),          # bias_hh_l0
        u(keys[4], (4 * HID, HID)),      # weight_ih_l1
        u(keys[5], (4 * HID, HID)),      # weight_hh_l1
        u(keys[6], (4 * HID,)),          # bias_ih_l1
        u(keys[7], (4 * HID,)),          # bias_hh_l1
        u(keys[8], (1, HID)),            # linear.weight
        u(keys[9], (1,)),                # linear.bias
    )


if __name__ == "__main__":
    root = jax.random.PRNGKey(0)
    pkey, xkey = jax.random.split(root)
    params = init_params(pkey)

    B, T = 2, 8
    x = jax.random.normal(xkey, (B, T, IN_DIM), jnp.float32)

    out = my_model_forward(x, params)
    jax.block_until_ready(out)
    assert out.shape == (B, 1) and out.dtype == jnp.float32
    print("KERNEL_OK")
</pallas_src>

<mosaic_0001>
module attributes {stable_mosaic.version = 11 : i64} {
  func.func @_lstm_head_kernel(%arg0: memref<16x6xf32, #tpu.memory_space<vmem>>, %arg1: memref<6x32xf32, #tpu.memory_space<vmem>>, %arg2: memref<8x32xf32, #tpu.memory_space<vmem>>, %arg3: memref<1x32xf32, #tpu.memory_space<vmem>>, %arg4: memref<16x32xf32, #tpu.memory_space<vmem>>, %arg5: memref<1x32xf32, #tpu.memory_space<vmem>>, %arg6: memref<8x1xf32, #tpu.memory_space<vmem>>, %arg7: memref<1x1xf32, #tpu.memory_space<vmem>>, %arg8: memref<2x1xf32, #tpu.memory_space<vmem>>) attributes {dimension_semantics = [], scalar_prefetch = 0 : i64, scratch_operands = 0 : i64, tpu.core_type = #tpu.core_type<tc>} {
    %c0 = arith.constant 0 : index
    %c0_0 = arith.constant 0 : index
    %0 = vector.load %arg2[%c0, %c0_0] : memref<8x32xf32, #tpu.memory_space<vmem>>, vector<8x32xf32>
    %c0_1 = arith.constant 0 : index
    %c0_2 = arith.constant 0 : index
    %1 = vector.load %arg4[%c0_1, %c0_2] : memref<16x32xf32, #tpu.memory_space<vmem>>, vector<16x32xf32>
    %c0_3 = arith.constant 0 : index
    %c0_4 = arith.constant 0 : index
    %2 = vector.load %arg0[%c0_3, %c0_4] : memref<16x6xf32, #tpu.memory_space<vmem>>, vector<16x6xf32>
    %c0_5 = arith.constant 0 : index
    %c0_6 = arith.constant 0 : index
    %3 = vector.load %arg1[%c0_5, %c0_6] : memref<6x32xf32, #tpu.memory_space<vmem>>, vector<6x32xf32>
    %cst = arith.constant dense<0.000000e+00> : vector<16x32xf32>
    %4 = tpu.matmul %2, %3, %cst {dimension_numbers = #tpu.dot_dimension_numbers<[1], [0], [0], [1], [0, 0, 1, 1], [], []>} : vector<16x6xf32>, vector<6x32xf32>, vector<16x32xf32> -> vector<16x32xf32>
    %c0_7 = arith.constant 0 : index
    %c0_8 = arith.constant 0 : index
    %5 = vector.load %arg3[%c0_7, %c0_8] : memref<1x32xf32, #tpu.memory_space<vmem>>, vector<1x32xf32>
    %6 = vector.broadcast %5 : vector<1x32xf32> to vector<16x32xf32>
    %7 = arith.addf %4, %6 : vector<16x32xf32>
    %c0_9 = arith.constant 0 : index
    %c0_10 = arith.constant 0 : index
    %8 = vector.load %arg5[%c0_9, %c0_10] : memref<1x32xf32, #tpu.memory_space<vmem>>, vector<1x32xf32>
    %9 = vector.shape_cast %8 : vector<1x32xf32> to vector<1x32xf32>
    %10 = vector.broadcast %9 : vector<1x32xf32> to vector<2x32xf32>
    %cst_11 = arith.constant 0.000000e+00 : f32
    %11 = vector.broadcast %cst_11 : f32 to vector<2x8xf32>
    %12 = vector.extract_strided_slice %7 {offsets = [0, 0], sizes = [2, 32], strides = [1, 1]} : vector<16x32xf32> to vector<2x32xf32>
    %cst_12 = arith.constant dense<0.000000e+00> : vector<2x32xf32>
    %13 = tpu.matmul %11, %0, %cst_12 {dimension_numbers = #tpu.dot_dimension_numbers<[1], [0], [0], [1], [0, 0, 1, 1], [], []>} : vector<2x8xf32>, vector<8x32xf32>, vector<2x32xf32> -> vector<2x32xf32>
    %14 = arith.addf %12, %13 : vector<2x32xf32>
    %15 = vector.extract_strided_slice %14 {offsets = [0, 0], sizes = [2, 24], strides = [1, 1]} : vector<2x32xf32> to vector<2x24xf32>
    %16 = arith.negf %15 : vector<2x24xf32>
    %17 = math.exp %16 : vector<2x24xf32>
    %cst_13 = arith.constant 1.000000e+00 : f32
    %18 = vector.broadcast %cst_13 : f32 to vector<2x24xf32>
    %19 = arith.addf %18, %17 : vector<2x24xf32>
    %20 = arith.divf %18, %19 : vector<2x24xf32>
    %21 = vector.extract_strided_slice %20 {offsets = [0, 0], sizes = [2, 8], strides = [1, 1]} : vector<2x24xf32> to vector<2x8xf32>
    %22 = vector.extract_strided_slice %20 {offsets = [0, 8], sizes = [2, 8], strides = [1, 1]} : vector<2x24xf32> to vector<2x8xf32>
    %23 = vector.extract_strided_slice %20 {offsets = [0, 16], sizes = [2, 8], strides = [1, 1]} : vector<2x24xf32> to vector<2x8xf32>
    %24 = vector.extract_strided_slice %14 {offsets = [0, 24], sizes = [2, 8], strides = [1, 1]} : vector<2x32xf32> to vector<2x8xf32>
    %25 = math.tanh %24 : vector<2x8xf32>
    %26 = arith.mulf %22, %11 : vector<2x8xf32>
    %27 = arith.mulf %21, %25 : vector<2x8xf32>
    %28 = arith.addf %26, %27 : vector<2x8xf32>
    %29 = math.tanh %28 : vector<2x8xf32>
    %30 = arith.mulf %23, %29 : vector<2x8xf32>
    %31 = tpu.concatenate %30, %11 in 1 : vector<2x8xf32>, vector<2x8xf32> -> vector<2x16xf32>
    %cst_14 = arith.constant dense<0.000000e+00> : vector<2x32xf32>
    %32 = tpu.matmul %31, %1, %cst_14 {dimension_numbers = #tpu.dot_dimension_numbers<[1], [0], [0], [1], [0, 0, 1, 1], [], []>} : vector<2x16xf32>, vector<16x32xf32>, vector<2x32xf32> -> vector<2x32xf32>
    %33 = arith.addf %32, %10 : vector<2x32xf32>
    %34 = vector.extract_strided_slice %33 {offsets = [0, 0], sizes = [2, 24], strides = [1, 1]} : vector<2x32xf32> to vector<2x24xf32>
    %35 = arith.negf %34 : vector<2x24xf32>
    %36 = math.exp %35 : vector<2x24xf32>
    %cst_15 = arith.constant 1.000000e+00 : f32
    %37 = vector.broadcast %cst_15 : f32 to vector<2x24xf32>
    %38 = arith.addf %37, %36 : vector<2x24xf32>
    %39 = arith.divf %37, %38 : vector<2x24xf32>
    %40 = vector.extract_strided_slice %39 {offsets = [0, 0], sizes = [2, 8], strides = [1, 1]} : vector<2x24xf32> to vector<2x8xf32>
    %41 = vector.extract_strided_slice %39 {offsets = [0, 8], sizes = [2, 8], strides = [1, 1]} : vector<2x24xf32> to vector<2x8xf32>
    %42 = vector.extract_strided_slice %39 {offsets = [0, 16], sizes = [2, 8], strides = [1, 1]} : vector<2x24xf32> to vector<2x8xf32>
    %43 = vector.extract_strided_slice %33 {offsets = [0, 24], sizes = [2, 8], strides = [1, 1]} : vector<2x32xf32> to vector<2x8xf32>
    %44 = math.tanh %43 : vector<2x8xf32>
    %45 = arith.mulf %41, %11 : vector<2x8xf32>
    %46 = arith.mulf %40, %44 : vector<2x8xf32>
    %47 = arith.addf %45, %46 : vector<2x8xf32>
    %48 = math.tanh %47 : vector<2x8xf32>
    %49 = arith.mulf %42, %48 : vector<2x8xf32>
    %50 = vector.extract_strided_slice %7 {offsets = [2, 0], sizes = [2, 32], strides = [1, 1]} : vector<16x32xf32> to vector<2x32xf32>
    %cst_16 = arith.constant dense<0.000000e+00> : vector<2x32xf32>
    %51 = tpu.matmul %30, %0, %cst_16 {dimension_numbers = #tpu.dot_dimension_numbers<[1], [0], [0], [1], [0, 0, 1, 1], [], []>} : vector<2x8xf32>, vector<8x32xf32>, vector<2x32xf32> -> vector<2x32xf32>
    %52 = arith.addf %50, %51 : vector<2x32xf32>
    %53 = vector.extract_strided_slice %52 {offsets = [0, 0], sizes = [2, 24], strides = [1, 1]} : vector<2x32xf32> to vector<2x24xf32>
    %54 = arith.negf %53 : vector<2x24xf32>
    %55 = math.exp %54 : vector<2x24xf32>
    %cst_17 = arith.constant 1.000000e+00 : f32
    %56 = vector.broadcast %cst_17 : f32 to vector<2x24xf32>
    %57 = arith.addf %56, %55 : vector<2x24xf32>
    %58 = arith.divf %56, %57 : vector<2x24xf32>
    %59 = vector.extract_strided_slice %58 {offsets = [0, 0], sizes = [2, 8], strides = [1, 1]} : vector<2x24xf32> to vector<2x8xf32>
    %60 = vector.extract_strided_slice %58 {offsets = [0, 8], sizes = [2, 8], strides = [1, 1]} : vector<2x24xf32> to vector<2x8xf32>
    %61 = vector.extract_strided_slice %58 {offsets = [0, 16], sizes = [2, 8], strides = [1, 1]} : vector<2x24xf32> to vector<2x8xf32>
    %62 = vector.extract_strided_slice %52 {offsets = [0, 24], sizes = [2, 8], strides = [1, 1]} : vector<2x32xf32> to vector<2x8xf32>
    %63 = math.tanh %62 : vector<2x8xf32>
    %64 = arith.mulf %60, %28 : vector<2x8xf32>
    %65 = arith.mulf %59, %63 : vector<2x8xf32>
    %66 = arith.addf %64, %65 : vector<2x8xf32>
    %67 = math.tanh %66 : vector<2x8xf32>
    %68 = arith.mulf %61, %67 : vector<2x8xf32>
    %69 = tpu.concatenate %68, %49 in 1 : vector<2x8xf32>, vector<2x8xf32> -> vector<2x16xf32>
    %cst_18 = arith.constant dense<0.000000e+00> : vector<2x32xf32>
    %70 = tpu.matmul %69, %1, %cst_18 {dimension_numbers = #tpu.dot_dimension_numbers<[1], [0], [0], [1], [0, 0, 1, 1], [], []>} : vector<2x16xf32>, vector<16x32xf32>, vector<2x32xf32> -> vector<2x32xf32>
    %71 = arith.addf %70, %10 : vector<2x32xf32>
    %72 = vector.extract_strided_slice %71 {offsets = [0, 0], sizes = [2, 24], strides = [1, 1]} : vector<2x32xf32> to vector<2x24xf32>
    %73 = arith.negf %72 : vector<2x24xf32>
    %74 = math.exp %73 : vector<2x24xf32>
    %cst_19 = arith.constant 1.000000e+00 : f32
    %75 = vector.broadcast %cst_19 : f32 to vector<2x24xf32>
    %76 = arith.addf %75, %74 : vector<2x24xf32>
    %77 = arith.divf %75, %76 : vector<2x24xf32>
    %78 = vector.extract_strided_slice %77 {offsets = [0, 0], sizes = [2, 8], strides = [1, 1]} : vector<2x24xf32> to vector<2x8xf32>
    %79 = vector.extract_strided_slice %77 {offsets = [0, 8], sizes = [2, 8], strides = [1, 1]} : vector<2x24xf32> to vector<2x8xf32>
    %80 = vector.extract_strided_slice %77 {offsets = [0, 16], sizes = [2, 8], strides = [1, 1]} : vector<2x24xf32> to vector<2x8xf32>
    %81 = vector.extract_strided_slice %71 {offsets = [0, 24], sizes = [2, 8], strides = [1, 1]} : vector<2x32xf32> to vector<2x8xf32>
    %82 = math.tanh %81 : vector<2x8xf32>
    %83 = arith.mulf %79, %47 : vector<2x8xf32>
    %84 = arith.mulf %78, %82 : vector<2x8xf32>
    %85 = arith.addf %83, %84 : vector<2x8xf32>
    %86 = math.tanh %85 : vector<2x8xf32>
    %87 = arith.mulf %80, %86 : vector<2x8xf32>
    %88 = vector.extract_strided_slice %7 {offsets = [4, 0], sizes = [2, 32], strides = [1, 1]} : vector<16x32xf32> to vector<2x32xf32>
    %cst_20 = arith.constant dense<0.000000e+00> : vector<2x32xf32>
    %89 = tpu.matmul %68, %0, %cst_20 {dimension_numbers = #tpu.dot_dimension_numbers<[1], [0], [0], [1], [0, 0, 1, 1], [], []>} : vector<2x8xf32>, vector<8x32xf32>, vector<2x32xf32> -> vector<2x32xf32>
    %90 = arith.addf %88, %89 : vector<2x32xf32>
    %91 = vector.extract_strided_slice %90 {offsets = [0, 0], sizes = [2, 24], strides = [1, 1]} : vector<2x32xf32> to vector<2x24xf32>
    %92 = arith.negf %91 : vector<2x24xf32>
    %93 = math.exp %92 : vector<2x24xf32>
    %cst_21 = arith.constant 1.000000e+00 : f32
    %94 = vector.broadcast %cst_21 : f32 to vector<2x24xf32>
    %95 = arith.addf %94, %93 : vector<2x24xf32>
    %96 = arith.divf %94, %95 : vector<2x24xf32>
    %97 = vector.extract_strided_slice %96 {offsets = [0, 0], sizes = [2, 8], strides = [1, 1]} : vector<2x24xf32> to vector<2x8xf32>
    %98 = vector.extract_strided_slice %96 {offsets = [0, 8], sizes = [2, 8], strides = [1, 1]} : vector<2x24xf32> to vector<2x8xf32>
    %99 = vector.extract_strided_slice %96 {offsets = [0, 16], sizes = [2, 8], strides = [1, 1]} : vector<2x24xf32> to vector<2x8xf32>
    %100 = vector.extract_strided_slice %90 {offsets = [0, 24], sizes = [2, 8], strides = [1, 1]} : vector<2x32xf32> to vector<2x8xf32>
    %101 = math.tanh %100 : vector<2x8xf32>
    %102 = arith.mulf %98, %66 : vector<2x8xf32>
    %103 = arith.mulf %97, %101 : vector<2x8xf32>
    %104 = arith.addf %102, %103 : vector<2x8xf32>
    %105 = math.tanh %104 : vector<2x8xf32>
    %106 = arith.mulf %99, %105 : vector<2x8xf32>
    %107 = tpu.concatenate %106, %87 in 1 : vector<2x8xf32>, vector<2x8xf32> -> vector<2x16xf32>
    %cst_22 = arith.constant dense<0.000000e+00> : vector<2x32xf32>
    %108 = tpu.matmul %107, %1, %cst_22 {dimension_numbers = #tpu.dot_dimension_numbers<[1], [0], [0], [1], [0, 0, 1, 1], [], []>} : vector<2x16xf32>, vector<16x32xf32>, vector<2x32xf32> -> vector<2x32xf32>
    %109 = arith.addf %108, %10 : vector<2x32xf32>
    %110 = vector.extract_strided_slice %109 {offsets = [0, 0], sizes = [2, 24], strides = [1, 1]} : vector<2x32xf32> to vector<2x24xf32>
    %111 = arith.negf %110 : vector<2x24xf32>
    %112 = math.exp %111 : vector<2x24xf32>
    %cst_23 = arith.constant 1.000000e+00 : f32
    %113 = vector.broadcast %cst_23 : f32 to vector<2x24xf32>
    %114 = arith.addf %113, %112 : vector<2x24xf32>
    %115 = arith.divf %113, %114 : vector<2x24xf32>
    %116 = vector.extract_strided_slice %115 {offsets = [0, 0], sizes = [2, 8], strides = [1, 1]} : vector<2x24xf32> to vector<2x8xf32>
    %117 = vector.extract_strided_slice %115 {offsets = [0, 8], sizes = [2, 8], strides = [1, 1]} : vector<2x24xf32> to vector<2x8xf32>
    %118 = vector.extract_strided_slice %115 {offsets = [0, 16], sizes = [2, 8], strides = [1, 1]} : vector<2x24xf32> to vector<2x8xf32>
    %119 = vector.extract_strided_slice %109 {offsets = [0, 24], sizes = [2, 8], strides = [1, 1]} : vector<2x32xf32> to vector<2x8xf32>
    %120 = math.tanh %119 : vector<2x8xf32>
    %121 = arith.mulf %117, %85 : vector<2x8xf32>
    %122 = arith.mulf %116, %120 : vector<2x8xf32>
    %123 = arith.addf %121, %122 : vector<2x8xf32>
    %124 = math.tanh %123 : vector<2x8xf32>
    %125 = arith.mulf %118, %124 : vector<2x8xf32>
    %126 = vector.extract_strided_slice %7 {offsets = [6, 0], sizes = [2, 32], strides = [1, 1]} : vector<16x32xf32> to vector<2x32xf32>
    %cst_24 = arith.constant dense<0.000000e+00> : vector<2x32xf32>
    %127 = tpu.matmul %106, %0, %cst_24 {dimension_numbers = #tpu.dot_dimension_numbers<[1], [0], [0], [1], [0, 0, 1, 1], [], []>} : vector<2x8xf32>, vector<8x32xf32>, vector<2x32xf32> -> vector<2x32xf32>
    %128 = arith.addf %126, %127 : vector<2x32xf32>
    %129 = vector.extract_strided_slice %128 {offsets = [0, 0], sizes = [2, 24], strides = [1, 1]} : vector<2x32xf32> to vector<2x24xf32>
    %130 = arith.negf %129 : vector<2x24xf32>
    %131 = math.exp %130 : vector<2x24xf32>
    %cst_25 = arith.constant 1.000000e+00 : f32
    %132 = vector.broadcast %cst_25 : f32 to vector<2x24xf32>
    %133 = arith.addf %132, %131 : vector<2x24xf32>
    %134 = arith.divf %132, %133 : vector<2x24xf32>
    %135 = vector.extract_strided_slice %134 {offsets = [0, 0], sizes = [2, 8], strides = [1, 1]} : vector<2x24xf32> to vector<2x8xf32>
    %136 = vector.extract_strided_slice %134 {offsets = [0, 8], sizes = [2, 8], strides = [1, 1]} : vector<2x24xf32> to vector<2x8xf32>
    %137 = vector.extract_strided_slice %134 {offsets = [0, 16], sizes = [2, 8], strides = [1, 1]} : vector<2x24xf32> to vector<2x8xf32>
    %138 = vector.extract_strided_slice %128 {offsets = [0, 24], sizes = [2, 8], strides = [1, 1]} : vector<2x32xf32> to vector<2x8xf32>
    %139 = math.tanh %138 : vector<2x8xf32>
    %140 = arith.mulf %136, %104 : vector<2x8xf32>
    %141 = arith.mulf %135, %139 : vector<2x8xf32>
    %142 = arith.addf %140, %141 : vector<2x8xf32>
    %143 = math.tanh %142 : vector<2x8xf32>
    %144 = arith.mulf %137, %143 : vector<2x8xf32>
    %145 = tpu.concatenate %144, %125 in 1 : vector<2x8xf32>, vector<2x8xf32> -> vector<2x16xf32>
    %cst_26 = arith.constant dense<0.000000e+00> : vector<2x32xf32>
    %146 = tpu.matmul %145, %1, %cst_26 {dimension_numbers = #tpu.dot_dimension_numbers<[1], [0], [0], [1], [0, 0, 1, 1], [], []>} : vector<2x16xf32>, vector<16x32xf32>, vector<2x32xf32> -> vector<2x32xf32>
    %147 = arith.addf %146, %10 : vector<2x32xf32>
    %148 = vector.extract_strided_slice %147 {offsets = [0, 0], sizes = [2, 24], strides = [1, 1]} : vector<2x32xf32> to vector<2x24xf32>
    %149 = arith.negf %148 : vector<2x24xf32>
    %150 = math.exp %149 : vector<2x24xf32>
    %cst_27 = arith.constant 1.000000e+00 : f32
    %151 = vector.broadcast %cst_27 : f32 to vector<2x24xf32>
    %152 = arith.addf %151, %150 : vector<2x24xf32>
    %153 = arith.divf %151, %152 : vector<2x24xf32>
    %154 = vector.extract_strided_slice %153 {offsets = [0, 0], sizes = [2, 8], strides = [1, 1]} : vector<2x24xf32> to vector<2x8xf32>
    %155 = vector.extract_strided_slice %153 {offsets = [0, 8], sizes = [2, 8], strides = [1, 1]} : vector<2x24xf32> to vector<2x8xf32>
    %156 = vector.extract_strided_slice %153 {offsets = [0, 16], sizes = [2, 8], strides = [1, 1]} : vector<2x24xf32> to vector<2x8xf32>
    %157 = vector.extract_strided_slice %147 {offsets = [0, 24], sizes = [2, 8], strides = [1, 1]} : vector<2x32xf32> to vector<2x8xf32>
    %158 = math.tanh %157 : vector<2x8xf32>
    %159 = arith.mulf %155, %123 : vector<2x8xf32>
    %160 = arith.mulf %154, %158 : vector<2x8xf32>
    %161 = arith.addf %159, %160 : vector<2x8xf32>
    %162 = math.tanh %161 : vector<2x8xf32>
    %163 = arith.mulf %156, %162 : vector<2x8xf32>
    %164 = vector.extract_strided_slice %7 {offsets = [8, 0], sizes = [2, 32], strides = [1, 1]} : vector<16x32xf32> to vector<2x32xf32>
    %cst_28 = arith.constant dense<0.000000e+00> : vector<2x32xf32>
    %165 = tpu.matmul %144, %0, %cst_28 {dimension_numbers = #tpu.dot_dimension_numbers<[1], [0], [0], [1], [0, 0, 1, 1], [], []>} : vector<2x8xf32>, vector<8x32xf32>, vector<2x32xf32> -> vector<2x32xf32>
    %166 = arith.addf %164, %165 : vector<2x32xf32>
    %167 = vector.extract_strided_slice %166 {offsets = [0, 0], sizes = [2, 24], strides = [1, 1]} : vector<2x32xf32> to vector<2x24xf32>
    %168 = arith.negf %167 : vector<2x24xf32>
    %169 = math.exp %168 : vector<2x24xf32>
    %cst_29 = arith.constant 1.000000e+00 : f32
    %170 = vector.broadcast %cst_29 : f32 to vector<2x24xf32>
    %171 = arith.addf %170, %169 : vector<2x24xf32>
    %172 = arith.divf %170, %171 : vector<2x24xf32>
    %173 = vector.extract_strided_slice %172 {offsets = [0, 0], sizes = [2, 8], strides = [1, 1]} : vector<2x24xf32> to vector<2x8xf32>
    %174 = vector.extract_strided_slice %172 {offsets = [0, 8], sizes = [2, 8], strides = [1, 1]} : vector<2x24xf32> to vector<2x8xf32>
    %175 = vector.extract_strided_slice %172 {offsets = [0, 16], sizes = [2, 8], strides = [1, 1]} : vector<2x24xf32> to vector<2x8xf32>
    %176 = vector.extract_strided_slice %166 {offsets = [0, 24], sizes = [2, 8], strides = [1, 1]} : vector<2x32xf32> to vector<2x8xf32>
    %177 = math.tanh %176 : vector<2x8xf32>
    %178 = arith.mulf %174, %142 : vector<2x8xf32>
    %179 = arith.mulf %173, %177 : vector<2x8xf32>
    %180 = arith.addf %178, %179 : vector<2x8xf32>
    %181 = math.tanh %180 : vector<2x8xf32>
    %182 = arith.mulf %175, %181 : vector<2x8xf32>
    %183 = tpu.concatenate %182, %163 in 1 : vector<2x8xf32>, vector<2x8xf32> -> vector<2x16xf32>
    %cst_30 = arith.constant dense<0.000000e+00> : vector<2x32xf32>
    %184 = tpu.matmul %183, %1, %cst_30 {dimension_numbers = #tpu.dot_dimension_numbers<[1], [0], [0], [1], [0, 0, 1, 1], [], []>} : vector<2x16xf32>, vector<16x32xf32>, vector<2x32xf32> -> vector<2x32xf32>
    %185 = arith.addf %184, %10 : vector<2x32xf32>
    %186 = vector.extract_strided_slice %185 {offsets = [0, 0], sizes = [2, 24], strides = [1, 1]} : vector<2x32xf32> to vector<2x24xf32>
    %187 = arith.negf %186 : vector<2x24xf32>
    %188 = math.exp %187 : vector<2x24xf32>
    %cst_31 = arith.constant 1.000000e+00 : f32
    %189 = vector.broadcast %cst_31 : f32 to vector<2x24xf32>
    %190 = arith.addf %189, %188 : vector<2x24xf32>
    %191 = arith.divf %189, %190 : vector<2x24xf32>
    %192 = vector.extract_strided_slice %191 {offsets = [0, 0], sizes = [2, 8], strides = [1, 1]} : vector<2x24xf32> to vector<2x8xf32>
    %193 = vector.extract_strided_slice %191 {offsets = [0, 8], sizes = [2, 8], strides = [1, 1]} : vector<2x24xf32> to vector<2x8xf32>
    %194 = vector.extract_strided_slice %191 {offsets = [0, 16], sizes = [2, 8], strides = [1, 1]} : vector<2x24xf32> to vector<2x8xf32>
    %195 = vector.extract_strided_slice %185 {offsets = [0, 24], sizes = [2, 8], strides = [1, 1]} : vector<2x32xf32> to vector<2x8xf32>
    %196 = math.tanh %195 : vector<2x8xf32>
    %197 = arith.mulf %193, %161 : vector<2x8xf32>
    %198 = arith.mulf %192, %196 : vector<2x8xf32>
    %199 = arith.addf %197, %198 : vector<2x8xf32>
    %200 = math.tanh %199 : vector<2x8xf32>
    %201 = arith.mulf %194, %200 : vector<2x8xf32>
    %202 = vector.extract_strided_slice %7 {offsets = [10, 0], sizes = [2, 32], strides = [1, 1]} : vector<16x32xf32> to vector<2x32xf32>
    %cst_32 = arith.constant dense<0.000000e+00> : vector<2x32xf32>
    %203 = tpu.matmul %182, %0, %cst_32 {dimension_numbers = #tpu.dot_dimension_numbers<[1], [0], [0], [1], [0, 0, 1, 1], [], []>} : vector<2x8xf32>, vector<8x32xf32>, vector<2x32xf32> -> vector<2x32xf32>
    %204 = arith.addf %202, %203 : vector<2x32xf32>
    %205 = vector.extract_strided_slice %204 {offsets = [0, 0], sizes = [2, 24], strides = [1, 1]} : vector<2x32xf32> to vector<2x24xf32>
    %206 = arith.negf %205 : vector<2x24xf32>
    %207 = math.exp %206 : vector<2x24xf32>
    %cst_33 = arith.constant 1.000000e+00 : f32
    %208 = vector.broadcast %cst_33 : f32 to vector<2x24xf32>
    %209 = arith.addf %208, %207 : vector<2x24xf32>
    %210 = arith.divf %208, %209 : vector<2x24xf32>
    %211 = vector.extract_strided_slice %210 {offsets = [0, 0], sizes = [2, 8], strides = [1, 1]} : vector<2x24xf32> to vector<2x8xf32>
    %212 = vector.extract_strided_slice %210 {offsets = [0, 8], sizes = [2, 8], strides = [1, 1]} : vector<2x24xf32> to vector<2x8xf32>
    %213 = vector.extract_strided_slice %210 {offsets = [0, 16], sizes = [2, 8], strides = [1, 1]} : vector<2x24xf32> to vector<2x8xf32>
    %214 = vector.extract_strided_slice %204 {offsets = [0, 24], sizes = [2, 8], strides = [1, 1]} : vector<2x32xf32> to vector<2x8xf32>
    %215 = math.tanh %214 : vector<2x8xf32>
    %216 = arith.mulf %212, %180 : vector<2x8xf32>
    %217 = arith.mulf %211, %215 : vector<2x8xf32>
    %218 = arith.addf %216, %217 : vector<2x8xf32>
    %219 = math.tanh %218 : vector<2x8xf32>
    %220 = arith.mulf %213, %219 : vector<2x8xf32>
    %221 = tpu.concatenate %220, %201 in 1 : vector<2x8xf32>, vector<2x8xf32> -> vector<2x16xf32>
    %cst_34 = arith.constant dense<0.000000e+00> : vector<2x32xf32>
    %222 = tpu.matmul %221, %1, %cst_34 {dimension_numbers = #tpu.dot_dimension_numbers<[1], [0], [0], [1], [0, 0, 1, 1], [], []>} : vector<2x16xf32>, vector<16x32xf32>, vector<2x32xf32> -> vector<2x32xf32>
    %223 = arith.addf %222, %10 : vector<2x32xf32>
    %224 = vector.extract_strided_slice %223 {offsets = [0, 0], sizes = [2, 24], strides = [1, 1]} : vector<2x32xf32> to vector<2x24xf32>
    %225 = arith.negf %224 : vector<2x24xf32>
    %226 = math.exp %225 : vector<2x24xf32>
    %cst_35 = arith.constant 1.000000e+00 : f32
    %227 = vector.broadcast %cst_35 : f32 to vector<2x24xf32>
    %228 = arith.addf %227, %226 : vector<2x24xf32>
    %229 = arith.divf %227, %228 : vector<2x24xf32>
    %230 = vector.extract_strided_slice %229 {offsets = [0, 0], sizes = [2, 8], strides = [1, 1]} : vector<2x24xf32> to vector<2x8xf32>
    %231 = vector.extract_strided_slice %229 {offsets = [0, 8], sizes = [2, 8], strides = [1, 1]} : vector<2x24xf32> to vector<2x8xf32>
    %232 = vector.extract_strided_slice %229 {offsets = [0, 16], sizes = [2, 8], strides = [1, 1]} : vector<2x24xf32> to vector<2x8xf32>
    %233 = vector.extract_strided_slice %223 {offsets = [0, 24], sizes = [2, 8], strides = [1, 1]} : vector<2x32xf32> to vector<2x8xf32>
    %234 = math.tanh %233 : vector<2x8xf32>
    %235 = arith.mulf %231, %199 : vector<2x8xf32>
    %236 = arith.mulf %230, %234 : vector<2x8xf32>
    %237 = arith.addf %235, %236 : vector<2x8xf32>
    %238 = math.tanh %237 : vector<2x8xf32>
    %239 = arith.mulf %232, %238 : vector<2x8xf32>
    %240 = vector.extract_strided_slice %7 {offsets = [12, 0], sizes = [2, 32], strides = [1, 1]} : vector<16x32xf32> to vector<2x32xf32>
    %cst_36 = arith.constant dense<0.000000e+00> : vector<2x32xf32>
    %241 = tpu.matmul %220, %0, %cst_36 {dimension_numbers = #tpu.dot_dimension_numbers<[1], [0], [0], [1], [0, 0, 1, 1], [], []>} : vector<2x8xf32>, vector<8x32xf32>, vector<2x32xf32> -> vector<2x32xf32>
    %242 = arith.addf %240, %241 : vector<2x32xf32>
    %243 = vector.extract_strided_slice %242 {offsets = [0, 0], sizes = [2, 24], strides = [1, 1]} : vector<2x32xf32> to vector<2x24xf32>
    %244 = arith.negf %243 : vector<2x24xf32>
    %245 = math.exp %244 : vector<2x24xf32>
    %cst_37 = arith.constant 1.000000e+00 : f32
    %246 = vector.broadcast %cst_37 : f32 to vector<2x24xf32>
    %247 = arith.addf %246, %245 : vector<2x24xf32>
    %248 = arith.divf %246, %247 : vector<2x24xf32>
    %249 = vector.extract_strided_slice %248 {offsets = [0, 0], sizes = [2, 8], strides = [1, 1]} : vector<2x24xf32> to vector<2x8xf32>
    %250 = vector.extract_strided_slice %248 {offsets = [0, 8], sizes = [2, 8], strides = [1, 1]} : vector<2x24xf32> to vector<2x8xf32>
    %251 = vector.extract_strided_slice %248 {offsets = [0, 16], sizes = [2, 8], strides = [1, 1]} : vector<2x24xf32> to vector<2x8xf32>
    %252 = vector.extract_strided_slice %242 {offsets = [0, 24], sizes = [2, 8], strides = [1, 1]} : vector<2x32xf32> to vector<2x8xf32>
    %253 = math.tanh %252 : vector<2x8xf32>
    %254 = arith.mulf %250, %218 : vector<2x8xf32>
    %255 = arith.mulf %249, %253 : vector<2x8xf32>
    %256 = arith.addf %254, %255 : vector<2x8xf32>
    %257 = math.tanh %256 : vector<2x8xf32>
    %258 = arith.mulf %251, %257 : vector<2x8xf32>
    %259 = tpu.concatenate %258, %239 in 1 : vector<2x8xf32>, vector<2x8xf32> -> vector<2x16xf32>
    %cst_38 = arith.constant dense<0.000000e+00> : vector<2x32xf32>
    %260 = tpu.matmul %259, %1, %cst_38 {dimension_numbers = #tpu.dot_dimension_numbers<[1], [0], [0], [1], [0, 0, 1, 1], [], []>} : vector<2x16xf32>, vector<16x32xf32>, vector<2x32xf32> -> vector<2x32xf32>
    %261 = arith.addf %260, %10 : vector<2x32xf32>
    %262 = vector.extract_strided_slice %261 {offsets = [0, 0], sizes = [2, 24], strides = [1, 1]} : vector<2x32xf32> to vector<2x24xf32>
    %263 = arith.negf %262 : vector<2x24xf32>
    %264 = math.exp %263 : vector<2x24xf32>
    %cst_39 = arith.constant 1.000000e+00 : f32
    %265 = vector.broadcast %cst_39 : f32 to vector<2x24xf32>
    %266 = arith.addf %265, %264 : vector<2x24xf32>
    %267 = arith.divf %265, %266 : vector<2x24xf32>
    %268 = vector.extract_strided_slice %267 {offsets = [0, 0], sizes = [2, 8], strides = [1, 1]} : vector<2x24xf32> to vector<2x8xf32>
    %269 = vector.extract_strided_slice %267 {offsets = [0, 8], sizes = [2, 8], strides = [1, 1]} : vector<2x24xf32> to vector<2x8xf32>
    %270 = vector.extract_strided_slice %267 {offsets = [0, 16], sizes = [2, 8], strides = [1, 1]} : vector<2x24xf32> to vector<2x8xf32>
    %271 = vector.extract_strided_slice %261 {offsets = [0, 24], sizes = [2, 8], strides = [1, 1]} : vector<2x32xf32> to vector<2x8xf32>
    %272 = math.tanh %271 : vector<2x8xf32>
    %273 = arith.mulf %269, %237 : vector<2x8xf32>
    %274 = arith.mulf %268, %272 : vector<2x8xf32>
    %275 = arith.addf %273, %274 : vector<2x8xf32>
    %276 = math.tanh %275 : vector<2x8xf32>
    %277 = arith.mulf %270, %276 : vector<2x8xf32>
    %278 = vector.extract_strided_slice %7 {offsets = [14, 0], sizes = [2, 32], strides = [1, 1]} : vector<16x32xf32> to vector<2x32xf32>
    %cst_40 = arith.constant dense<0.000000e+00> : vector<2x32xf32>
    %279 = tpu.matmul %258, %0, %cst_40 {dimension_numbers = #tpu.dot_dimension_numbers<[1], [0], [0], [1], [0, 0, 1, 1], [], []>} : vector<2x8xf32>, vector<8x32xf32>, vector<2x32xf32> -> vector<2x32xf32>
    %280 = arith.addf %278, %279 : vector<2x32xf32>
    %281 = vector.extract_strided_slice %280 {offsets = [0, 0], sizes = [2, 24], strides = [1, 1]} : vector<2x32xf32> to vector<2x24xf32>
    %282 = arith.negf %281 : vector<2x24xf32>
    %283 = math.exp %282 : vector<2x24xf32>
    %cst_41 = arith.constant 1.000000e+00 : f32
    %284 = vector.broadcast %cst_41 : f32 to vector<2x24xf32>
    %285 = arith.addf %284, %283 : vector<2x24xf32>
    %286 = arith.divf %284, %285 : vector<2x24xf32>
    %287 = vector.extract_strided_slice %286 {offsets = [0, 0], sizes = [2, 8], strides = [1, 1]} : vector<2x24xf32> to vector<2x8xf32>
    %288 = vector.extract_strided_slice %286 {offsets = [0, 8], sizes = [2, 8], strides = [1, 1]} : vector<2x24xf32> to vector<2x8xf32>
    %289 = vector.extract_strided_slice %286 {offsets = [0, 16], sizes = [2, 8], strides = [1, 1]} : vector<2x24xf32> to vector<2x8xf32>
    %290 = vector.extract_strided_slice %280 {offsets = [0, 24], sizes = [2, 8], strides = [1, 1]} : vector<2x32xf32> to vector<2x8xf32>
    %291 = math.tanh %290 : vector<2x8xf32>
    %292 = arith.mulf %288, %256 : vector<2x8xf32>
    %293 = arith.mulf %287, %291 : vector<2x8xf32>
    %294 = arith.addf %292, %293 : vector<2x8xf32>
    %295 = math.tanh %294 : vector<2x8xf32>
    %296 = arith.mulf %289, %295 : vector<2x8xf32>
    %297 = tpu.concatenate %296, %277 in 1 : vector<2x8xf32>, vector<2x8xf32> -> vector<2x16xf32>
    %cst_42 = arith.constant dense<0.000000e+00> : vector<2x32xf32>
    %298 = tpu.matmul %297, %1, %cst_42 {dimension_numbers = #tpu.dot_dimension_numbers<[1], [0], [0], [1], [0, 0, 1, 1], [], []>} : vector<2x16xf32>, vector<16x32xf32>, vector<2x32xf32> -> vector<2x32xf32>
    %299 = arith.addf %298, %10 : vector<2x32xf32>
    %300 = vector.extract_strided_slice %299 {offsets = [0, 0], sizes = [2, 24], strides = [1, 1]} : vector<2x32xf32> to vector<2x24xf32>
    %301 = arith.negf %300 : vector<2x24xf32>
    %302 = math.exp %301 : vector<2x24xf32>
    %cst_43 = arith.constant 1.000000e+00 : f32
    %303 = vector.broadcast %cst_43 : f32 to vector<2x24xf32>
    %304 = arith.addf %303, %302 : vector<2x24xf32>
    %305 = arith.divf %303, %304 : vector<2x24xf32>
    %306 = vector.extract_strided_slice %305 {offsets = [0, 0], sizes = [2, 8], strides = [1, 1]} : vector<2x24xf32> to vector<2x8xf32>
    %307 = vector.extract_strided_slice %305 {offsets = [0, 8], sizes = [2, 8], strides = [1, 1]} : vector<2x24xf32> to vector<2x8xf32>
    %308 = vector.extract_strided_slice %305 {offsets = [0, 16], sizes = [2, 8], strides = [1, 1]} : vector<2x24xf32> to vector<2x8xf32>
    %309 = vector.extract_strided_slice %299 {offsets = [0, 24], sizes = [2, 8], strides = [1, 1]} : vector<2x32xf32> to vector<2x8xf32>
    %310 = math.tanh %309 : vector<2x8xf32>
    %311 = arith.mulf %307, %275 : vector<2x8xf32>
    %312 = arith.mulf %306, %310 : vector<2x8xf32>
    %313 = arith.addf %311, %312 : vector<2x8xf32>
    %314 = math.tanh %313 : vector<2x8xf32>
    %315 = arith.mulf %308, %314 : vector<2x8xf32>
    %cst_44 = arith.constant 0.000000e+00 : f32
    %316 = vector.broadcast %cst_44 : f32 to vector<2x8xf32>
    %317 = arith.maximumf %315, %316 : vector<2x8xf32>
    %c0_45 = arith.constant 0 : index
    %c0_46 = arith.constant 0 : index
    %318 = vector.load %arg6[%c0_45, %c0_46] : memref<8x1xf32, #tpu.memory_space<vmem>>, vector<8x1xf32>
    %cst_47 = arith.constant dense<0.000000e+00> : vector<2x1xf32>
    %319 = tpu.matmul %317, %318, %cst_47 {dimension_numbers = #tpu.dot_dimension_numbers<[1], [0], [0], [1], [0, 0, 1, 1], [], []>} : vector<2x8xf32>, vector<8x1xf32>, vector<2x1xf32> -> vector<2x1xf32>
    %c0_48 = arith.constant 0 : index
    %c0_49 = arith.constant 0 : index
    %320 = vector.load %arg7[%c0_48, %c0_49] : memref<1x1xf32, #tpu.memory_space<vmem>>, vector<1x1xf32>
    %321 = vector.broadcast %320 : vector<1x1xf32> to vector<2x1xf32>
    %322 = arith.addf %319, %321 : vector<2x1xf32>
    %c0_50 = arith.constant 0 : index
    %c0_51 = arith.constant 0 : index
    %323 = vector.load %arg8[%c0_50, %c0_51] : memref<2x1xf32, #tpu.memory_space<vmem>>, vector<2x1xf32>
    tpu.vector_store %arg8[%c0_50, %c0_51], %322 {strides = array<i32>} : memref<2x1xf32, #tpu.memory_space<vmem>>, vector<2x1xf32>,
    return
  }
}

</mosaic_0001>

<llo_original>
// kernel: tpu_custom_call.1
$region0: #{tpu_custom_call.1}
  #allocation0 [shape = 'u32[]', space=smem, size = 0x4, offset = 0x4, fixed_abs, tag = 'smem constant byte address 0x4 - core index']
  #allocation1 [shape = 'u32[144,128]{1,0:T(1,128)}', space=vmem, size = 0x12000, scoped, tag = 'internal scratch']
  #allocation2 [shape = 'f32[1,1]{1,0:T(1,128)S(1)}', space=vmem, size = 0x200, scoped, tag = 'scoped memory for tpu_custom_call.1']
  %s0 = inlined_call_operand.vmem [shape: f32[16,6], index: 0, kind: input, shape index: {}]
  %s1 = inlined_call_operand.vmem [shape: f32[6,32], index: 1, kind: input, shape index: {}]
  %s2 = inlined_call_operand.vmem [shape: f32[8,32], index: 2, kind: input, shape index: {}]
  %s3 = inlined_call_operand.vmem [shape: f32[1,32], index: 3, kind: input, shape index: {}]
  %s4 = inlined_call_operand.vmem [shape: f32[16,32], index: 4, kind: input, shape index: {}]
  %s5 = inlined_call_operand.vmem [shape: f32[1,32], index: 5, kind: input, shape index: {}]
  %s6 = inlined_call_operand.vmem [shape: f32[8,1], index: 6, kind: input, shape index: {}]
  %s7 = inlined_call_operand.<no memory space> [shape: f32[1,1], index: 7, kind: input, shape index: {}]
  %s8 = inlined_call_operand.vmem [shape: f32[2,1], index: 8, kind: output, shape index: {}]
  %s9 = sld [smem:[#allocation0]]
  $region42: #{tpu_custom_call.1} parent=0
    _
  %s11 = ssub.s32 1, %s9
  %s12 = scalar_select 0, %s11, %s9
  %v13 = vstv %s7
  %14 = vst [vmem:[#allocation2] sm:$0x1] %v13
  // Predicated region
  $region2: #{tpu_custom_call.1} parent=0 // pred_check
    _
  $region3: #{tpu_custom_call.1} parent=0 // pred_check_branch
    %16 = sbr.rel (0) target = $region5
  $region4: #{tpu_custom_call.1} parent=0 // pred_region
    _
  $region5: #{tpu_custom_call.1} parent=0 // pred_fallthru
    _
  // Predicated region
  $region6: #{tpu_custom_call.1} parent=0 // pred_check
    _
  $region7: #{tpu_custom_call.1} parent=0 // pred_check_branch
    %18 = sbr.rel (0) target = $region9
  $region8: #{tpu_custom_call.1} parent=0 // pred_region
    _
  $region9: #{tpu_custom_call.1} parent=0 // pred_fallthru
    _
  // Predicated region
  $region10: #{tpu_custom_call.1} parent=0 // pred_check
    _
  $region11: #{tpu_custom_call.1} parent=0 // pred_check_branch
    %20 = sbr.rel (0) target = $region13
  $region12: #{tpu_custom_call.1} parent=0 // pred_region
    _
  $region13: #{tpu_custom_call.1} parent=0 // pred_fallthru
    _
  // Predicated region
  $region14: #{tpu_custom_call.1} parent=0 // pred_check
    _
  $region15: #{tpu_custom_call.1} parent=0 // pred_check_branch
    %22 = sbr.rel (0) target = $region17
  $region16: #{tpu_custom_call.1} parent=0 // pred_region
    _
  $region17: #{tpu_custom_call.1} parent=0 // pred_fallthru
    _
  // Predicated region
  $region18: #{tpu_custom_call.1} parent=0 // pred_check
    _
  $region19: #{tpu_custom_call.1} parent=0 // pred_check_branch
    %24 = sbr.rel (0) target = $region21
  $region20: #{tpu_custom_call.1} parent=0 // pred_region
    _
  $region21: #{tpu_custom_call.1} parent=0 // pred_fallthru
    _
  // Predicated region
  $region22: #{tpu_custom_call.1} parent=0 // pred_check
    _
  $region23: #{tpu_custom_call.1} parent=0 // pred_check_branch
    %26 = sbr.rel (0) target = $region25
  $region24: #{tpu_custom_call.1} parent=0 // pred_region
    _
  $region25: #{tpu_custom_call.1} parent=0 // pred_fallthru
    _
  // Predicated region
  $region26: #{tpu_custom_call.1} parent=0 // pred_check
    _
  $region27: #{tpu_custom_call.1} parent=0 // pred_check_branch
    %28 = sbr.rel (0) target = $region29
  $region28: #{tpu_custom_call.1} parent=0 // pred_region
    _
  $region29: #{tpu_custom_call.1} parent=0 // pred_fallthru
    _
  // Predicated region
  $region30: #{tpu_custom_call.1} parent=0 // pred_check
    _
  $region31: #{tpu_custom_call.1} parent=0 // pred_check_branch
    %30 = sbr.rel (0) target = $region33
  $region32: #{tpu_custom_call.1} parent=0 // pred_region
    _
  $region33: #{tpu_custom_call.1} parent=0 // pred_fallthru
    _
  %v31 = vld [vmem:[%s2] sm:$0xff]
  %v32 = vld [vmem:[%s4] sm:$0xff]
  %v33 = vld [vmem:[%s4 + $0x8] sm:$0xff]
  %v34 = vld [vmem:[%s0] sm:$0xff]
  %v35 = vld [vmem:[%s0 + $0x8] sm:$0xff]
  %v36 = vld [vmem:[%s1] sm:$0x3f]
  %v37 = vld [vmem:[%s3] sm:$0x1]
  %v39 = vlaneseq
  %v40 = vshrl.u32 %v39, 7
  %v41 = vsub.s32 0, %v40
  %v42 = vrot.slane %v37, %v41
  %vm44 = vcmask 48128
  %v46 = vsel %vm44, %v34, 0
  %v49 = vsel %vm44, %v35, 0
  %vm51 = vcmask 1045504
  %v53 = vsel %vm51, %v36, 0
  %55 = vmatprep.subr.mxu0 0.0
  %56 = vmatpush1.msra.mxu0 %v53
  %57 = vmatprep.subr.mxu0 0.0
  %58 = vmatpush1.msra.mxu0 0.0
  %59 = vmatprep.subr.mxu0 0.0
  %60 = vmatpush1.msra.mxu0 0.0
  %61 = vmatprep.subr.mxu0 0.0
  %62 = vmatpush1.msra.mxu0 0.0
  %63 = vmatprep.subr.mxu0 0.0
  %64 = vmatpush1.msra.mxu0 0.0
  %65 = vmatprep.subr.mxu0 0.0
  %66 = vmatpush1.msra.mxu0 0.0
  %67 = vmatprep.subr.mxu0 0.0
  %68 = vmatpush1.msra.mxu0 0.0
  %69 = vmatprep.subr.mxu0 0.0
  %70 = vmatpush1.msra.mxu0 0.0
  %71 = vmatprep.subr.mxu0 0.0
  %72 = vmatpush1.msra.mxu0 0.0
  %73 = vmatprep.subr.mxu0 0.0
  %74 = vmatpush1.msra.mxu0 0.0
  %75 = vmatprep.subr.mxu0 0.0
  %76 = vmatpush1.msra.mxu0 0.0
  %77 = vmatprep.subr.mxu0 0.0
  %78 = vmatpush1.msra.mxu0 0.0
  %79 = vmatprep.subr.mxu0 0.0
  %80 = vmatpush1.msra.mxu0 0.0
  %81 = vmatprep.subr.mxu0 0.0
  %82 = vmatpush1.msra.mxu0 0.0
  %83 = vmatprep.subr.mxu0 0.0
  %84 = vmatpush1.msra.mxu0 0.0
  %85 = vmatprep.subr.mxu0 0.0
  %86 = vmatpush1.msra.mxu0 0.0
  %87 = vmatprep.subr.mxu0 0.0
  %88 = vmatpush1.msra.mxu0 0.0
  %89 = vmatprep.subr.mxu0 0.0
  %90 = vmatpush1.msra.mxu0 0.0
  %91 = vmatprep.subr.mxu0 0.0
  %92 = vmatpush1.msra.mxu0 0.0
  %93 = vmatprep.subr.mxu0 0.0
  %94 = vmatpush1.msra.mxu0 0.0
  %95 = vmatprep.subr.mxu0 0.0
  %96 = vmatpush1.msra.mxu0 0.0
  %97 = vmatprep.subr.mxu0 0.0
  %98 = vmatpush1.msra.mxu0 0.0
  %99 = vmatprep.subr.mxu0 0.0
  %100 = vmatpush1.msra.mxu0 0.0
  %101 = vmatprep.subr.mxu0 0.0
  %102 = vmatpush1.msra.mxu0 0.0
  %103 = vmatprep.subr.mxu0 0.0
  %104 = vmatpush1.msra.mxu0 0.0
  %105 = vmatprep.subr.mxu0 0.0
  %106 = vmatpush1.msra.mxu0 0.0
  %107 = vmatprep.subr.mxu0 0.0
  %108 = vmatpush1.msra.mxu0 0.0
  %109 = vmatprep.subr.mxu0 0.0
  %110 = vmatpush1.msra.mxu0 0.0
  %111 = vmatprep.subr.mxu0 0.0
  %112 = vmatpush1.msra.mxu0 0.0
  %113 = vmatprep.subr.mxu0 0.0
  %114 = vmatpush1.msra.mxu0 0.0
  %115 = vmatprep.subr.mxu0 0.0
  %116 = vmatpush1.msra.mxu0 0.0
  %117 = vmatprep.subr.mxu0 0.0
  %118 = vmatpush1.msra.mxu0 0.0
  %119 = vmatprep.mubr.f32.mxu0 0.0
  %120 = vmatmul.mubr.f32.gmra.mrb[0].mxu0 %v46
  %v121 = vpop.f32.mrb[0].mxu0
  %v122 = vadd.f32 %v42, %v121
  %v123 = vpop.f32.mrb[0].mxu0
  %124 = vmatprep.mubr.f32.mxu0 0.0
  %125 = vmatmul.mubr.f32.gmra.mrb[0].mxu0 %v49
  %v126 = vpop.f32.mrb[0].mxu0
  %v127 = vadd.f32 %v42, %v126
  %v128 = vpop.f32.mrb[0].mxu0
  %129 = vdwg.mxu0
  %v130 = vld [vmem:[%s5] sm:$0x1]
  %v132 = vlaneseq
  %v133 = vshrl.u32 %v132, 7
  %v134 = vsub.s32 0, %v133
  %v135 = vrot.slane %v130, %v134
  %vm137 = vcmask 64512
  %v139 = vsel %vm137, 0.0, 0
  %141 = vmatprep.subr.mxu0 0.0
  %142 = vmatpush1.msra.mxu0 %v31
  %143 = vmatprep.subr.mxu0 0.0
  %144 = vmatpush1.msra.mxu0 0.0
  %145 = vmatprep.subr.mxu0 0.0
  %146 = vmatpush1.msra.mxu0 0.0
  %147 = vmatprep.subr.mxu0 0.0
  %148 = vmatpush1.msra.mxu0 0.0
  %149 = vmatprep.subr.mxu0 0.0
  %150 = vmatpush1.msra.mxu0 0.0
  %151 = vmatprep.subr.mxu0 0.0
  %152 = vmatpush1.msra.mxu0 0.0
  %153 = vmatprep.subr.mxu0 0.0
  %154 = vmatpush1.msra.mxu0 0.0
  %155 = vmatprep.subr.mxu0 0.0
  %156 = vmatpush1.msra.mxu0 0.0
  %157 = vmatprep.subr.mxu0 0.0
  %158 = vmatpush1.msra.mxu0 0.0
  %159 = vmatprep.subr.mxu0 0.0
  %160 = vmatpush1.msra.mxu0 0.0
  %161 = vmatprep.subr.mxu0 0.0
  %162 = vmatpush1.msra.mxu0 0.0
  %163 = vmatprep.subr.mxu0 0.0
  %164 = vmatpush1.msra.mxu0 0.0
  %165 = vmatprep.subr.mxu0 0.0
  %166 = vmatpush1.msra.mxu0 0.0
  %167 = vmatprep.subr.mxu0 0.0
  %168 = vmatpush1.msra.mxu0 0.0
  %169 = vmatprep.subr.mxu0 0.0
  %170 = vmatpush1.msra.mxu0 0.0
  %171 = vmatprep.subr.mxu0 0.0
  %172 = vmatpush1.msra.mxu0 0.0
  %173 = vmatprep.subr.mxu0 0.0
  %174 = vmatpush1.msra.mxu0 0.0
  %175 = vmatprep.subr.mxu0 0.0
  %176 = vmatpush1.msra.mxu0 0.0
  %177 = vmatprep.subr.mxu0 0.0
  %178 = vmatpush1.msra.mxu0 0.0
  %179 = vmatprep.subr.mxu0 0.0
  %180 = vmatpush1.msra.mxu0 0.0
  %181 = vmatprep.subr.mxu0 0.0
  %182 = vmatpush1.msra.mxu0 0.0
  %183 = vmatprep.subr.mxu0 0.0
  %184 = vmatpush1.msra.mxu0 0.0
  %185 = vmatprep.subr.mxu0 0.0
  %186 = vmatpush1.msra.mxu0 0.0
  %187 = vmatprep.subr.mxu0 0.0
  %188 = vmatpush1.msra.mxu0 0.0
  %189 = vmatprep.subr.mxu0 0.0
  %190 = vmatpush1.msra.mxu0 0.0
  %191 = vmatprep.subr.mxu0 0.0
  %192 = vmatpush1.msra.mxu0 0.0
  %193 = vmatprep.subr.mxu0 0.0
  %194 = vmatpush1.msra.mxu0 0.0
  %195 = vmatprep.subr.mxu0 0.0
  %196 = vmatpush1.msra.mxu0 0.0
  %197 = vmatprep.subr.mxu0 0.0
  %198 = vmatpush1.msra.mxu0 0.0
  %199 = vmatprep.subr.mxu0 0.0
  %200 = vmatpush1.msra.mxu0 0.0
  %201 = vmatprep.subr.mxu0 0.0
  %202 = vmatpush1.msra.mxu0 0.0
  %203 = vmatprep.subr.mxu0 0.0
  %204 = vmatpush1.msra.mxu0 0.0
  %205 = vmatprep.mubr.f32.mxu0 0.0
  %206 = vmatmul.mubr.f32.gmra.mrb[0].mxu0 %v139
  %v207 = vpop.f32.mrb[0].mxu0
  %v208 = vadd.f32 0.0, %v207
  %v209 = vpop.f32.mrb[0].mxu0
  %210 = vdwg.mxu0
  %v211 = vadd.f32 %v122, %v208
  %v212 = vxor.u32 %v211, 2147483648
  %v213 = vmul.f32 %v212, 1.442695
  %v214 = vpow.pop %v213
  %v215 = vadd.f32 %v214, 1.0
  %v216 = vrcp.pop %v215
  %v217 = vmul.f32 1.0, %v216
  %v218 = vtanh.pop %v211
  %v219 = vmul.f32 %v217, 0.0
  %221 = vrot.lane.b32.xlu0 %v218, 104
  %v222 = vpop.permute.xlu0 %221
  %v224 = vmul.f32 %v217, %v222
  %226 = vrot.lane.b32.xlu0 %v224, 8
  %v227 = vpop.permute.xlu0 %226
  %v229 = vadd.f32 %v219, %v227
  %v230 = vtanh.pop %v229
  %232 = vrot.lane.b32.xlu0 %v230, 8
  %v233 = vpop.permute.xlu0 %232
  %v235 = vmul.f32 %v217, %v233
  %237 = vrot.lane.b32.xlu0 %v235, 112
  %v238 = vpop.permute.xlu0 %237
  %v240 = vsel %vm137, %v238, 0.0
  %vm241 = vcmask 130048
  %v243 = vsel %vm241, %v240, 0
  %245 = vmatprep.subr.mxu0 0.0
  %246 = vmatpush1.msra.mxu0 %v32
  %247 = vmatprep.subr.mxu0 0.0
  %248 = vmatpush1.msra.mxu0 %v33
  %249 = vmatprep.subr.mxu0 0.0
  %250 = vmatpush1.msra.mxu0 0.0
  %251 = vmatprep.subr.mxu0 0.0
  %252 = vmatpush1.msra.mxu0 0.0
  %253 = vmatprep.subr.mxu0 0.0
  %254 = vmatpush1.msra.mxu0 0.0
  %255 = vmatprep.subr.mxu0 0.0
  %256 = vmatpush1.msra.mxu0 0.0
  %257 = vmatprep.subr.mxu0 0.0
  %258 = vmatpush1.msra.mxu0 0.0
  %259 = vmatprep.subr.mxu0 0.0
  %260 = vmatpush1.msra.mxu0 0.0
  %261 = vmatprep.subr.mxu0 0.0
  %262 = vmatpush1.msra.mxu0 0.0
  %263 = vmatprep.subr.mxu0 0.0
  %264 = vmatpush1.msra.mxu0 0.0
  %265 = vmatprep.subr.mxu0 0.0
  %266 = vmatpush1.msra.mxu0 0.0
  %267 = vmatprep.subr.mxu0 0.0
  %268 = vmatpush1.msra.mxu0 0.0
  %269 = vmatprep.subr.mxu0 0.0
  %270 = vmatpush1.msra.mxu0 0.0
  %271 = vmatprep.subr.mxu0 0.0
  %272 = vmatpush1.msra.mxu0 0.0
  %273 = vmatprep.subr.mxu0 0.0
  %274 = vmatpush1.msra.mxu0 0.0
  %275 = vmatprep.subr.mxu0 0.0
  %276 = vmatpush1.msra.mxu0 0.0
  %277 = vmatprep.subr.mxu0 0.0
  %278 = vmatpush1.msra.mxu0 0.0
  %279 = vmatprep.subr.mxu0 0.0
  %280 = vmatpush1.msra.mxu0 0.0
  %281 = vmatprep.subr.mxu0 0.0
  %282 = vmatpush1.msra.mxu0 0.0
  %283 = vmatprep.subr.mxu0 0.0
  %284 = vmatpush1.msra.mxu0 0.0
  %285 = vmatprep.subr.mxu0 0.0
  %286 = vmatpush1.msra.mxu0 0.0
  %287 = vmatprep.subr.mxu0 0.0
  %288 = vmatpush1.msra.mxu0 0.0
  %289 = vmatprep.subr.mxu0 0.0
  %290 = vmatpush1.msra.mxu0 0.0
  %291 = vmatprep.subr.mxu0 0.0
  %292 = vmatpush1.msra.mxu0 0.0
  %293 = vmatprep.subr.mxu0 0.0
  %294 = vmatpush1.msra.mxu0 0.0
  %295 = vmatprep.subr.mxu0 0.0
  %296 = vmatpush1.msra.mxu0 0.0
  %297 = vmatprep.subr.mxu0 0.0
  %298 = vmatpush1.msra.mxu0 0.0
  %299 = vmatprep.subr.mxu0 0.0
  %300 = vmatpush1.msra.mxu0 0.0
  %301 = vmatprep.subr.mxu0 0.0
  %302 = vmatpush1.msra.mxu0 0.0
  %303 = vmatprep.subr.mxu0 0.0
  %304 = vmatpush1.msra.mxu0 0.0
  %305 = vmatprep.subr.mxu0 0.0
  %306 = vmatpush1.msra.mxu0 0.0
  %307 = vmatprep.subr.mxu0 0.0
  %308 = vmatpush1.msra.mxu0 0.0
  %309 = vmatprep.mubr.f32.mxu0 0.0
  %310 = vmatmul.mubr.f32.gmra.mrb[0].mxu0 %v243
  %v311 = vpop.f32.mrb[0].mxu0
  %v312 = vadd.f32 %v135, %v311
  %v313 = vpop.f32.mrb[0].mxu0
  %314 = vdwg.mxu0
  %v315 = vxor.u32 %v312, 2147483648
  %v316 = vmul.f32 %v315, 1.442695
  %v317 = vpow.pop %v316
  %v318 = vadd.f32 %v317, 1.0
  %v319 = vrcp.pop %v318
  %v320 = vmul.f32 1.0, %v319
  %v321 = vtanh.pop %v312
  %v322 = vmul.f32 %v320, 0.0
  %324 = vrot.lane.b32.xlu0 %v321, 104
  %v325 = vpop.permute.xlu0 %324
  %v327 = vmul.f32 %v320, %v325
  %329 = vrot.lane.b32.xlu0 %v327, 8
  %v330 = vpop.permute.xlu0 %329
  %v332 = vadd.f32 %v322, %v330
  %v333 = vtanh.pop %v332
  %335 = vrot.lane.b32.xlu0 %v333, 8
  %v336 = vpop.permute.xlu0 %335
  %v338 = vmul.f32 %v320, %v336
  %v339 = vsel %vm137, %v238, 0
  %341 = vmatprep.subr.mxu0 0.0
  %342 = vmatpush1.msra.mxu0 %v31
  %343 = vmatprep.subr.mxu0 0.0
  %344 = vmatpush1.msra.mxu0 0.0
  %345 = vmatprep.subr.mxu0 0.0
  %346 = vmatpush1.msra.mxu0 0.0
  %347 = vmatprep.subr.mxu0 0.0
  %348 = vmatpush1.msra.mxu0 0.0
  %349 = vmatprep.subr.mxu0 0.0
  %350 = vmatpush1.msra.mxu0 0.0
  %351 = vmatprep.subr.mxu0 0.0
  %352 = vmatpush1.msra.mxu0 0.0
  %353 = vmatprep.subr.mxu0 0.0
  %354 = vmatpush1.msra.mxu0 0.0
  %355 = vmatprep.subr.mxu0 0.0
  %356 = vmatpush1.msra.mxu0 0.0
  %357 = vmatprep.subr.mxu0 0.0
  %358 = vmatpush1.msra.mxu0 0.0
  %359 = vmatprep.subr.mxu0 0.0
  %360 = vmatpush1.msra.mxu0 0.0
  %361 = vmatprep.subr.mxu0 0.0
  %362 = vmatpush1.msra.mxu0 0.0
  %363 = vmatprep.subr.mxu0 0.0
  %364 = vmatpush1.msra.mxu0 0.0
  %365 = vmatprep.subr.mxu0 0.0
  %366 = vmatpush1.msra.mxu0 0.0
  %367 = vmatprep.subr.mxu0 0.0
  %368 = vmatpush1.msra.mxu0 0.0
  %369 = vmatprep.subr.mxu0 0.0
  %370 = vmatpush1.msra.mxu0 0.0
  %371 = vmatprep.subr.mxu0 0.0
  %372 = vmatpush1.msra.mxu0 0.0
  %373 = vmatprep.subr.mxu0 0.0
  %374 = vmatpush1.msra.mxu0 0.0
  %375 = vmatprep.subr.mxu0 0.0
  %376 = vmatpush1.msra.mxu0 0.0
  %377 = vmatprep.subr.mxu0 0.0
  %378 = vmatpush1.msra.mxu0 0.0
  %379 = vmatprep.subr.mxu0 0.0
  %380 = vmatpush1.msra.mxu0 0.0
  %381 = vmatprep.subr.mxu0 0.0
  %382 = vmatpush1.msra.mxu0 0.0
  %383 = vmatprep.subr.mxu0 0.0
  %384 = vmatpush1.msra.mxu0 0.0
  %385 = vmatprep.subr.mxu0 0.0
  %386 = vmatpush1.msra.mxu0 0.0
  %387 = vmatprep.subr.mxu0 0.0
  %388 = vmatpush1.msra.mxu0 0.0
  %389 = vmatprep.subr.mxu0 0.0
  %390 = vmatpush1.msra.mxu0 0.0
  %391 = vmatprep.subr.mxu0 0.0
  %392 = vmatpush1.msra.mxu0 0.0
  %393 = vmatprep.subr.mxu0 0.0
  %394 = vmatpush1.msra.mxu0 0.0
  %395 = vmatprep.subr.mxu0 0.0
  %396 = vmatpush1.msra.mxu0 0.0
  %397 = vmatprep.subr.mxu0 0.0
  %398 = vmatpush1.msra.mxu0 0.0
  %399 = vmatprep.subr.mxu0 0.0
  %400 = vmatpush1.msra.mxu0 0.0
  %401 = vmatprep.subr.mxu0 0.0
  %402 = vmatpush1.msra.mxu0 0.0
  %403 = vmatprep.subr.mxu0 0.0
  %404 = vmatpush1.msra.mxu0 0.0
  %405 = vmatprep.mubr.f32.mxu0 0.0
  %406 = vmatmul.mubr.f32.gmra.mrb[0].mxu0 %v339
  %v407 = vpop.f32.mrb[0].mxu0
  %v408 = vadd.f32 0.0, %v407
  %v409 = vpop.f32.mrb[0].mxu0
  %410 = vdwg.mxu0
  %v412 = vrot.slane %v408, 6
  %v414 = vadd.f32 %v122, %v412
  %v415 = vxor.u32 %v414, 2147483648
  %v416 = vmul.f32 %v415, 1.442695
  %v417 = vpow.pop %v416
  %v418 = vadd.f32 %v417, 1.0
  %v419 = vrcp.pop %v418
  %v420 = vmul.f32 1.0, %v419
  %v421 = vtanh.pop %v414
  %v423 = vrot.slane %v229, 6
  %v425 = vmul.f32 %v420, %v423
  %427 = vrot.lane.b32.xlu0 %v421, 104
  %v428 = vpop.permute.xlu0 %427
  %v430 = vmul.f32 %v420, %v428
  %432 = vrot.lane.b32.xlu0 %v430, 8
  %v433 = vpop.permute.xlu0 %432
  %v435 = vadd.f32 %v425, %v433
  %v436 = vtanh.pop %v435
  %438 = vrot.lane.b32.xlu0 %v436, 8
  %v439 = vpop.permute.xlu0 %438
  %v441 = vmul.f32 %v420, %v439
  %443 = vrot.lane.b32.xlu0 %v441, 112
  %v444 = vpop.permute.xlu0 %443
  %v447 = vrot.slane %v338, 6
  %448 = vrot.lane.b32.xlu0 %v447, 120
  %v449 = vpop.permute.xlu0 %448
  %v451 = vsel %vm137, %v444, %v449
  %v453 = vrot.slane %v451, 2
  %v454 = vsel %vm241, %v453, 0
  %456 = vmatprep.subr.mxu0 0.0
  %457 = vmatpush1.msra.mxu0 %v32
  %458 = vmatprep.subr.mxu0 0.0
  %459 = vmatpush1.msra.mxu0 %v33
  %460 = vmatprep.subr.mxu0 0.0
  %461 = vmatpush1.msra.mxu0 0.0
  %462 = vmatprep.subr.mxu0 0.0
  %463 = vmatpush1.msra.mxu0 0.0
  %464 = vmatprep.subr.mxu0 0.0
  %465 = vmatpush1.msra.mxu0 0.0
  %466 = vmatprep.subr.mxu0 0.0
  %467 = vmatpush1.msra.mxu0 0.0
  %468 = vmatprep.subr.mxu0 0.0
  %469 = vmatpush1.msra.mxu0 0.0
  %470 = vmatprep.subr.mxu0 0.0
  %471 = vmatpush1.msra.mxu0 0.0
  %472 = vmatprep.subr.mxu0 0.0
  %473 = vmatpush1.msra.mxu0 0.0
  %474 = vmatprep.subr.mxu0 0.0
  %475 = vmatpush1.msra.mxu0 0.0
  %476 = vmatprep.subr.mxu0 0.0
  %477 = vmatpush1.msra.mxu0 0.0
  %478 = vmatprep.subr.mxu0 0.0
  %479 = vmatpush1.msra.mxu0 0.0
  %480 = vmatprep.subr.mxu0 0.0
  %481 = vmatpush1.msra.mxu0 0.0
  %482 = vmatprep.subr.mxu0 0.0
  %483 = vmatpush1.msra.mxu0 0.0
  %484 = vmatprep.subr.mxu0 0.0
  %485 = vmatpush1.msra.mxu0 0.0
  %486 = vmatprep.subr.mxu0 0.0
  %487 = vmatpush1.msra.mxu0 0.0
  %488 = vmatprep.subr.mxu0 0.0
  %489 = vmatpush1.msra.mxu0 0.0
  %490 = vmatprep.subr.mxu0 0.0
  %491 = vmatpush1.msra.mxu0 0.0
  %492 = vmatprep.subr.mxu0 0.0
  %493 = vmatpush1.msra.mxu0 0.0
  %494 = vmatprep.subr.mxu0 0.0
  %495 = vmatpush1.msra.mxu0 0.0
  %496 = vmatprep.subr.mxu0 0.0
  %497 = vmatpush1.msra.mxu0 0.0
  %498 = vmatprep.subr.mxu0 0.0
  %499 = vmatpush1.msra.mxu0 0.0
  %500 = vmatprep.subr.mxu0 0.0
  %501 = vmatpush1.msra.mxu0 0.0
  %502 = vmatprep.subr.mxu0 0.0
  %503 = vmatpush1.msra.mxu0 0.0
  %504 = vmatprep.subr.mxu0 0.0
  %505 = vmatpush1.msra.mxu0 0.0
  %506 = vmatprep.subr.mxu0 0.0
  %507 = vmatpush1.msra.mxu0 0.0
  %508 = vmatprep.subr.mxu0 0.0
  %509 = vmatpush1.msra.mxu0 0.0
  %510 = vmatprep.subr.mxu0 0.0
  %511 = vmatpush1.msra.mxu0 0.0
  %512 = vmatprep.subr.mxu0 0.0
  %513 = vmatpush1.msra.mxu0 0.0
  %514 = vmatprep.subr.mxu0 0.0
  %515 = vmatpush1.msra.mxu0 0.0
  %516 = vmatprep.subr.mxu0 0.0
  %517 = vmatpush1.msra.mxu0 0.0
  %518 = vmatprep.subr.mxu0 0.0
  %519 = vmatpush1.msra.mxu0 0.0
  %520 = vmatprep.mubr.f32.mxu0 0.0
  %521 = vmatmul.mubr.f32.gmra.mrb[0].mxu0 %v454
  %v522 = vpop.f32.mrb[0].mxu0
  %v523 = vadd.f32 %v135, %v522
  %v524 = vpop.f32.mrb[0].mxu0
  %525 = vdwg.mxu0
  %v526 = vxor.u32 %v523, 2147483648
  %v527 = vmul.f32 %v526, 1.442695
  %v528 = vpow.pop %v527
  %v529 = vadd.f32 %v528, 1.0
  %v530 = vrcp.pop %v529
  %v531 = vmul.f32 1.0, %v530
  %v532 = vtanh.pop %v523
  %v533 = vmul.f32 %v531, %v332
  %535 = vrot.lane.b32.xlu0 %v532, 104
  %v536 = vpop.permute.xlu0 %535
  %v538 = vmul.f32 %v531, %v536
  %540 = vrot.lane.b32.xlu0 %v538, 8
  %v541 = vpop.permute.xlu0 %540
  %v543 = vadd.f32 %v533, %v541
  %v544 = vtanh.pop %v543
  %546 = vrot.lane.b32.xlu0 %v544, 8
  %v547 = vpop.permute.xlu0 %546
  %v549 = vmul.f32 %v531, %v547
  %v550 = vrot.slane %v441, 2
  %551 = vrot.lane.b32.xlu0 %v550, 112
  %v552 = vpop.permute.xlu0 %551
  %v553 = vsel %vm137, %v552, 0
  %555 = vmatprep.subr.mxu0 0.0
  %556 = vmatpush1.msra.mxu0 %v31
  %557 = vmatprep.subr.mxu0 0.0
  %558 = vmatpush1.msra.mxu0 0.0
  %559 = vmatprep.subr.mxu0 0.0
  %560 = vmatpush1.msra.mxu0 0.0
  %561 = vmatprep.subr.mxu0 0.0
  %562 = vmatpush1.msra.mxu0 0.0
  %563 = vmatprep.subr.mxu0 0.0
  %564 = vmatpush1.msra.mxu0 0.0
  %565 = vmatprep.subr.mxu0 0.0
  %566 = vmatpush1.msra.mxu0 0.0
  %567 = vmatprep.subr.mxu0 0.0
  %568 = vmatpush1.msra.mxu0 0.0
  %569 = vmatprep.subr.mxu0 0.0
  %570 = vmatpush1.msra.mxu0 0.0
  %571 = vmatprep.subr.mxu0 0.0
  %572 = vmatpush1.msra.mxu0 0.0
  %573 = vmatprep.subr.mxu0 0.0
  %574 = vmatpush1.msra.mxu0 0.0
  %575 = vmatprep.subr.mxu0 0.0
  %576 = vmatpush1.msra.mxu0 0.0
  %577 = vmatprep.subr.mxu0 0.0
  %578 = vmatpush1.msra.mxu0 0.0
  %579 = vmatprep.subr.mxu0 0.0
  %580 = vmatpush1.msra.mxu0 0.0
  %581 = vmatprep.subr.mxu0 0.0
  %582 = vmatpush1.msra.mxu0 0.0
  %583 = vmatprep.subr.mxu0 0.0
  %584 = vmatpush1.msra.mxu0 0.0
  %585 = vmatprep.subr.mxu0 0.0
  %586 = vmatpush1.msra.mxu0 0.0
  %587 = vmatprep.subr.mxu0 0.0
  %588 = vmatpush1.msra.mxu0 0.0
  %589 = vmatprep.subr.mxu0 0.0
  %590 = vmatpush1.msra.mxu0 0.0
  %591 = vmatprep.subr.mxu0 0.0
  %592 = vmatpush1.msra.mxu0 0.0
  %593 = vmatprep.subr.mxu0 0.0
  %594 = vmatpush1.msra.mxu0 0.0
  %595 = vmatprep.subr.mxu0 0.0
  %596 = vmatpush1.msra.mxu0 0.0
  %597 = vmatprep.subr.mxu0 0.0
  %598 = vmatpush1.msra.mxu0 0.0
  %599 = vmatprep.subr.mxu0 0.0
  %600 = vmatpush1.msra.mxu0 0.0
  %601 = vmatprep.subr.mxu0 0.0
  %602 = vmatpush1.msra.mxu0 0.0
  %603 = vmatprep.subr.mxu0 0.0
  %604 = vmatpush1.msra.mxu0 0.0
  %605 = vmatprep.subr.mxu0 0.0
  %606 = vmatpush1.msra.mxu0 0.0
  %607 = vmatprep.subr.mxu0 0.0
  %608 = vmatpush1.msra.mxu0 0.0
  %609 = vmatprep.subr.mxu0 0.0
  %610 = vmatpush1.msra.mxu0 0.0
  %611 = vmatprep.subr.mxu0 0.0
  %612 = vmatpush1.msra.mxu0 0.0
  %613 = vmatprep.subr.mxu0 0.0
  %614 = vmatpush1.msra.mxu0 0.0
  %615 = vmatprep.subr.mxu0 0.0
  %616 = vmatpush1.msra.mxu0 0.0
  %617 = vmatprep.subr.mxu0 0.0
  %618 = vmatpush1.msra.mxu0 0.0
  %619 = vmatprep.mubr.f32.mxu0 0.0
  %620 = vmatmul.mubr.f32.gmra.mrb[0].mxu0 %v553
  %v621 = vpop.f32.mrb[0].mxu0
  %v622 = vadd.f32 0.0, %v621
  %v623 = vpop.f32.mrb[0].mxu0
  %624 = vdwg.mxu0
  %v626 = vrot.slane %v622, 4
  %v628 = vadd.f32 %v122, %v626
  %v629 = vxor.u32 %v628, 2147483648
  %v630 = vmul.f32 %v629, 1.442695
  %v631 = vpow.pop %v630
  %v632 = vadd.f32 %v631, 1.0
  %v633 = vrcp.pop %v632
  %v634 = vmul.f32 1.0, %v633
  %v635 = vtanh.pop %v628
  %v637 = vrot.slane %v435, 6
  %v639 = vmul.f32 %v634, %v637
  %641 = vrot.lane.b32.xlu0 %v635, 104
  %v642 = vpop.permute.xlu0 %641
  %v644 = vmul.f32 %v634, %v642
  %646 = vrot.lane.b32.xlu0 %v644, 8
  %v647 = vpop.permute.xlu0 %646
  %v649 = vadd.f32 %v639, %v647
  %v650 = vtanh.pop %v649
  %652 = vrot.lane.b32.xlu0 %v650, 8
  %v653 = vpop.permute.xlu0 %652
  %v655 = vmul.f32 %v634, %v653
  %657 = vrot.lane.b32.xlu0 %v655, 112
  %v658 = vpop.permute.xlu0 %657
  %v661 = vrot.slane %v549, 4
  %662 = vrot.lane.b32.xlu0 %v661, 120
  %v663 = vpop.permute.xlu0 %662
  %v665 = vsel %vm137, %v658, %v663
  %v667 = vrot.slane %v665, 4
  %v668 = vsel %vm241, %v667, 0
  %670 = vmatprep.subr.mxu0 0.0
  %671 = vmatpush1.msra.mxu0 %v32
  %672 = vmatprep.subr.mxu0 0.0
  %673 = vmatpush1.msra.mxu0 %v33
  %674 = vmatprep.subr.mxu0 0.0
  %675 = vmatpush1.msra.mxu0 0.0
  %676 = vmatprep.subr.mxu0 0.0
  %677 = vmatpush1.msra.mxu0 0.0
  %678 = vmatprep.subr.mxu0 0.0
  %679 = vmatpush1.msra.mxu0 0.0
  %680 = vmatprep.subr.mxu0 0.0
  %681 = vmatpush1.msra.mxu0 0.0
  %682 = vmatprep.subr.mxu0 0.0
  %683 = vmatpush1.msra.mxu0 0.0
  %684 = vmatprep.subr.mxu0 0.0
  %685 = vmatpush1.msra.mxu0 0.0
  %686 = vmatprep.subr.mxu0 0.0
  %687 = vmatpush1.msra.mxu0 0.0
  %688 = vmatprep.subr.mxu0 0.0
  %689 = vmatpush1.msra.mxu0 0.0
  %690 = vmatprep.subr.mxu0 0.0
  %691 = vmatpush1.msra.mxu0 0.0
  %692 = vmatprep.subr.mxu0 0.0
  %693 = vmatpush1.msra.mxu0 0.0
  %694 = vmatprep.subr.mxu0 0.0
  %695 = vmatpush1.msra.mxu0 0.0
  %696 = vmatprep.subr.mxu0 0.0
  %697 = vmatpush1.msra.mxu0 0.0
  %698 = vmatprep.subr.mxu0 0.0
  %699 = vmatpush1.msra.mxu0 0.0
  %700 = vmatprep.subr.mxu0 0.0
  %701 = vmatpush1.msra.mxu0 0.0
  %702 = vmatprep.subr.mxu0 0.0
  %703 = vmatpush1.msra.mxu0 0.0
  %704 = vmatprep.subr.mxu0 0.0
  %705 = vmatpush1.msra.mxu0 0.0
  %706 = vmatprep.subr.mxu0 0.0
  %707 = vmatpush1.msra.mxu0 0.0
  %708 = vmatprep.subr.mxu0 0.0
  %709 = vmatpush1.msra.mxu0 0.0
  %710 = vmatprep.subr.mxu0 0.0
  %711 = vmatpush1.msra.mxu0 0.0
  %712 = vmatprep.subr.mxu0 0.0
  %713 = vmatpush1.msra.mxu0 0.0
  %714 = vmatprep.subr.mxu0 0.0
  %715 = vmatpush1.msra.mxu0 0.0
  %716 = vmatprep.subr.mxu0 0.0
  %717 = vmatpush1.msra.mxu0 0.0
  %718 = vmatprep.subr.mxu0 0.0
  %719 = vmatpush1.msra.mxu0 0.0
  %720 = vmatprep.subr.mxu0 0.0
  %721 = vmatpush1.msra.mxu0 0.0
  %722 = vmatprep.subr.mxu0 0.0
  %723 = vmatpush1.msra.mxu0 0.0
  %724 = vmatprep.subr.mxu0 0.0
  %725 = vmatpush1.msra.mxu0 0.0
  %726 = vmatprep.subr.mxu0 0.0
  %727 = vmatpush1.msra.mxu0 0.0
  %728 = vmatprep.subr.mxu0 0.0
  %729 = vmatpush1.msra.mxu0 0.0
  %730 = vmatprep.subr.mxu0 0.0
  %731 = vmatpush1.msra.mxu0 0.0
  %732 = vmatprep.subr.mxu0 0.0
  %733 = vmatpush1.msra.mxu0 0.0
  %734 = vmatprep.mubr.f32.mxu0 0.0
  %735 = vmatmul.mubr.f32.gmra.mrb[0].mxu0 %v668
  %v736 = vpop.f32.mrb[0].mxu0
  %v737 = vadd.f32 %v135, %v736
  %v738 = vpop.f32.mrb[0].mxu0
  %739 = vdwg.mxu0
  %v740 = vxor.u32 %v737, 2147483648
  %v741 = vmul.f32 %v740, 1.442695
  %v742 = vpow.pop %v741
  %v743 = vadd.f32 %v742, 1.0
  %v744 = vrcp.pop %v743
  %v745 = vmul.f32 1.0, %v744
  %v746 = vtanh.pop %v737
  %v747 = vmul.f32 %v745, %v543
  %749 = vrot.lane.b32.xlu0 %v746, 104
  %v750 = vpop.permute.xlu0 %749
  %v752 = vmul.f32 %v745, %v750
  %754 = vrot.lane.b32.xlu0 %v752, 8
  %v755 = vpop.permute.xlu0 %754
  %v757 = vadd.f32 %v747, %v755
  %v758 = vtanh.pop %v757
  %760 = vrot.lane.b32.xlu0 %v758, 8
  %v761 = vpop.permute.xlu0 %760
  %v763 = vmul.f32 %v745, %v761
  %v764 = vrot.slane %v655, 4
  %765 = vrot.lane.b32.xlu0 %v764, 112
  %v766 = vpop.permute.xlu0 %765
  %v767 = vsel %vm137, %v766, 0
  %769 = vmatprep.subr.mxu0 0.0
  %770 = vmatpush1.msra.mxu0 %v31
  %771 = vmatprep.subr.mxu0 0.0
  %772 = vmatpush1.msra.mxu0 0.0
  %773 = vmatprep.subr.mxu0 0.0
  %774 = vmatpush1.msra.mxu0 0.0
  %775 = vmatprep.subr.mxu0 0.0
  %776 = vmatpush1.msra.mxu0 0.0
  %777 = vmatprep.subr.mxu0 0.0
  %778 = vmatpush1.msra.mxu0 0.0
  %779 = vmatprep.subr.mxu0 0.0
  %780 = vmatpush1.msra.mxu0 0.0
  %781 = vmatprep.subr.mxu0 0.0
  %782 = vmatpush1.msra.mxu0 0.0
  %783 = vmatprep.subr.mxu0 0.0
  %784 = vmatpush1.msra.mxu0 0.0
  %785 = vmatprep.subr.mxu0 0.0
  %786 = vmatpush1.msra.mxu0 0.0
  %787 = vmatprep.subr.mxu0 0.0
  %788 = vmatpush1.msra.mxu0 0.0
  %789 = vmatprep.subr.mxu0 0.0
  %790 = vmatpush1.msra.mxu0 0.0
  %791 = vmatprep.subr.mxu0 0.0
  %792 = vmatpush1.msra.mxu0 0.0
  %793 = vmatprep.subr.mxu0 0.0
  %794 = vmatpush1.msra.mxu0 0.0
  %795 = vmatprep.subr.mxu0 0.0
  %796 = vmatpush1.msra.mxu0 0.0
  %797 = vmatprep.subr.mxu0 0.0
  %798 = vmatpush1.msra.mxu0 0.0
  %799 = vmatprep.subr.mxu0 0.0
  %800 = vmatpush1.msra.mxu0 0.0
  %801 = vmatprep.subr.mxu0 0.0
  %802 = vmatpush1.msra.mxu0 0.0
  %803 = vmatprep.subr.mxu0 0.0
  %804 = vmatpush1.msra.mxu0 0.0
  %805 = vmatprep.subr.mxu0 0.0
  %806 = vmatpush1.msra.mxu0 0.0
  %807 = vmatprep.subr.mxu0 0.0
  %808 = vmatpush1.msra.mxu0 0.0
  %809 = vmatprep.subr.mxu0 0.0
  %810 = vmatpush1.msra.mxu0 0.0
  %811 = vmatprep.subr.mxu0 0.0
  %812 = vmatpush1.msra.mxu0 0.0
  %813 = vmatprep.subr.mxu0 0.0
  %814 = vmatpush1.msra.mxu0 0.0
  %815 = vmatprep.subr.mxu0 0.0
  %816 = vmatpush1.msra.mxu0 0.0
  %817 = vmatprep.subr.mxu0 0.0
  %818 = vmatpush1.msra.mxu0 0.0
  %819 = vmatprep.subr.mxu0 0.0
  %820 = vmatpush1.msra.mxu0 0.0
  %821 = vmatprep.subr.mxu0 0.0
  %822 = vmatpush1.msra.mxu0 0.0
  %823 = vmatprep.subr.mxu0 0.0
  %824 = vmatpush1.msra.mxu0 0.0
  %825 = vmatprep.subr.mxu0 0.0
  %826 = vmatpush1.msra.mxu0 0.0
  %827 = vmatprep.subr.mxu0 0.0
  %828 = vmatpush1.msra.mxu0 0.0
  %829 = vmatprep.subr.mxu0 0.0
  %830 = vmatpush1.msra.mxu0 0.0
  %831 = vmatprep.subr.mxu0 0.0
  %832 = vmatpush1.msra.mxu0 0.0
  %833 = vmatprep.mubr.f32.mxu0 0.0
  %834 = vmatmul.mubr.f32.gmra.mrb[0].mxu0 %v767
  %v835 = vpop.f32.mrb[0].mxu0
  %v836 = vadd.f32 0.0, %v835
  %v837 = vpop.f32.mrb[0].mxu0
  %838 = vdwg.mxu0
  %v840 = vrot.slane %v836, 2
  %v842 = vadd.f32 %v122, %v840
  %v843 = vxor.u32 %v842, 2147483648
  %v844 = vmul.f32 %v843, 1.442695
  %v845 = vpow.pop %v844
  %v846 = vadd.f32 %v845, 1.0
  %v847 = vrcp.pop %v846
  %v848 = vmul.f32 1.0, %v847
  %v849 = vtanh.pop %v842
  %v851 = vrot.slane %v649, 6
  %v853 = vmul.f32 %v848, %v851
  %855 = vrot.lane.b32.xlu0 %v849, 104
  %v856 = vpop.permute.xlu0 %855
  %v858 = vmul.f32 %v848, %v856
  %860 = vrot.lane.b32.xlu0 %v858, 8
  %v861 = vpop.permute.xlu0 %860
  %v863 = vadd.f32 %v853, %v861
  %v864 = vtanh.pop %v863
  %866 = vrot.lane.b32.xlu0 %v864, 8
  %v867 = vpop.permute.xlu0 %866
  %v869 = vmul.f32 %v848, %v867
  %871 = vrot.lane.b32.xlu0 %v869, 112
  %v872 = vpop.permute.xlu0 %871
  %v875 = vrot.slane %v763, 2
  %876 = vrot.lane.b32.xlu0 %v875, 120
  %v877 = vpop.permute.xlu0 %876
  %v879 = vsel %vm137, %v872, %v877
  %v881 = vrot.slane %v879, 6
  %v882 = vsel %vm241, %v881, 0
  %884 = vmatprep.subr.mxu0 0.0
  %885 = vmatpush1.msra.mxu0 %v32
  %886 = vmatprep.subr.mxu0 0.0
  %887 = vmatpush1.msra.mxu0 %v33
  %888 = vmatprep.subr.mxu0 0.0
  %889 = vmatpush1.msra.mxu0 0.0
  %890 = vmatprep.subr.mxu0 0.0
  %891 = vmatpush1.msra.mxu0 0.0
  %892 = vmatprep.subr.mxu0 0.0
  %893 = vmatpush1.msra.mxu0 0.0
  %894 = vmatprep.subr.mxu0 0.0
  %895 = vmatpush1.msra.mxu0 0.0
  %896 = vmatprep.subr.mxu0 0.0
  %897 = vmatpush1.msra.mxu0 0.0
  %898 = vmatprep.subr.mxu0 0.0
  %899 = vmatpush1.msra.mxu0 0.0
  %900 = vmatprep.subr.mxu0 0.0
  %901 = vmatpush1.msra.mxu0 0.0
  %902 = vmatprep.subr.mxu0 0.0
  %903 = vmatpush1.msra.mxu0 0.0
  %904 = vmatprep.subr.mxu0 0.0
  %905 = vmatpush1.msra.mxu0 0.0
  %906 = vmatprep.subr.mxu0 0.0
  %907 = vmatpush1.msra.mxu0 0.0
  %908 = vmatprep.subr.mxu0 0.0
  %909 = vmatpush1.msra.mxu0 0.0
  %910 = vmatprep.subr.mxu0 0.0
  %911 = vmatpush1.msra.mxu0 0.0
  %912 = vmatprep.subr.mxu0 0.0
  %913 = vmatpush1.msra.mxu0 0.0
  %914 = vmatprep.subr.mxu0 0.0
  %915 = vmatpush1.msra.mxu0 0.0
  %916 = vmatprep.subr.mxu0 0.0
  %917 = vmatpush1.msra.mxu0 0.0
  %918 = vmatprep.subr.mxu0 0.0
  %919 = vmatpush1.msra.mxu0 0.0
  %920 = vmatprep.subr.mxu0 0.0
  %921 = vmatpush1.msra.mxu0 0.0
  %922 = vmatprep.subr.mxu0 0.0
  %923 = vmatpush1.msra.mxu0 0.0
  %924 = vmatprep.subr.mxu0 0.0
  %925 = vmatpush1.msra.mxu0 0.0
  %926 = vmatprep.subr.mxu0 0.0
  %927 = vmatpush1.msra.mxu0 0.0
  %928 = vmatprep.subr.mxu0 0.0
  %929 = vmatpush1.msra.mxu0 0.0
  %930 = vmatprep.subr.mxu0 0.0
  %931 = vmatpush1.msra.mxu0 0.0
  %932 = vmatprep.subr.mxu0 0.0
  %933 = vmatpush1.msra.mxu0 0.0
  %934 = vmatprep.subr.mxu0 0.0
  %935 = vmatpush1.msra.mxu0 0.0
  %936 = vmatprep.subr.mxu0 0.0
  %937 = vmatpush1.msra.mxu0 0.0
  %938 = vmatprep.subr.mxu0 0.0
  %939 = vmatpush1.msra.mxu0 0.0
  %940 = vmatprep.subr.mxu0 0.0
  %941 = vmatpush1.msra.mxu0 0.0
  %942 = vmatprep.subr.mxu0 0.0
  %943 = vmatpush1.msra.mxu0 0.0
  %944 = vmatprep.subr.mxu0 0.0
  %945 = vmatpush1.msra.mxu0 0.0
  %946 = vmatprep.subr.mxu0 0.0
  %947 = vmatpush1.msra.mxu0 0.0
  %948 = vmatprep.mubr.f32.mxu0 0.0
  %949 = vmatmul.mubr.f32.gmra.mrb[0].mxu0 %v882
  %v950 = vpop.f32.mrb[0].mxu0
  %v951 = vadd.f32 %v135, %v950
  %v952 = vpop.f32.mrb[0].mxu0
  %953 = vdwg.mxu0
  %v954 = vxor.u32 %v951, 2147483648
  %v955 = vmul.f32 %v954, 1.442695
  %v956 = vpow.pop %v955
  %v957 = vadd.f32 %v956, 1.0
  %v958 = vrcp.pop %v957
  %v959 = vmul.f32 1.0, %v958
  %v960 = vtanh.pop %v951
  %v961 = vmul.f32 %v959, %v757
  %963 = vrot.lane.b32.xlu0 %v960, 104
  %v964 = vpop.permute.xlu0 %963
  %v966 = vmul.f32 %v959, %v964
  %968 = vrot.lane.b32.xlu0 %v966, 8
  %v969 = vpop.permute.xlu0 %968
  %v971 = vadd.f32 %v961, %v969
  %v972 = vtanh.pop %v971
  %974 = vrot.lane.b32.xlu0 %v972, 8
  %v975 = vpop.permute.xlu0 %974
  %v977 = vmul.f32 %v959, %v975
  %v978 = vrot.slane %v869, 6
  %979 = vrot.lane.b32.xlu0 %v978, 112
  %v980 = vpop.permute.xlu0 %979
  %v981 = vsel %vm137, %v980, 0
  %983 = vmatprep.subr.mxu0 0.0
  %984 = vmatpush1.msra.mxu0 %v31
  %985 = vmatprep.subr.mxu0 0.0
  %986 = vmatpush1.msra.mxu0 0.0
  %987 = vmatprep.subr.mxu0 0.0
  %988 = vmatpush1.msra.mxu0 0.0
  %989 = vmatprep.subr.mxu0 0.0
  %990 = vmatpush1.msra.mxu0 0.0
  %991 = vmatprep.subr.mxu0 0.0
  %992 = vmatpush1.msra.mxu0 0.0
  %993 = vmatprep.subr.mxu0 0.0
  %994 = vmatpush1.msra.mxu0 0.0
  %995 = vmatprep.subr.mxu0 0.0
  %996 = vmatpush1.msra.mxu0 0.0
  %997 = vmatprep.subr.mxu0 0.0
  %998 = vmatpush1.msra.mxu0 0.0
  %999 = vmatprep.subr.mxu0 0.0
  %1000 = vmatpush1.msra.mxu0 0.0
  %1001 = vmatprep.subr.mxu0 0.0
  %1002 = vmatpush1.msra.mxu0 0.0
  %1003 = vmatprep.subr.mxu0 0.0
  %1004 = vmatpush1.msra.mxu0 0.0
  %1005 = vmatprep.subr.mxu0 0.0
  %1006 = vmatpush1.msra.mxu0 0.0
  %1007 = vmatprep.subr.mxu0 0.0
  %1008 = vmatpush1.msra.mxu0 0.0
  %1009 = vmatprep.subr.mxu0 0.0
  %1010 = vmatpush1.msra.mxu0 0.0
  %1011 = vmatprep.subr.mxu0 0.0
  %1012 = vmatpush1.msra.mxu0 0.0
  %1013 = vmatprep.subr.mxu0 0.0
  %1014 = vmatpush1.msra.mxu0 0.0
  %1015 = vmatprep.subr.mxu0 0.0
  %1016 = vmatpush1.msra.mxu0 0.0
  %1017 = vmatprep.subr.mxu0 0.0
  %1018 = vmatpush1.msra.mxu0 0.0
  %1019 = vmatprep.subr.mxu0 0.0
  %1020 = vmatpush1.msra.mxu0 0.0
  %1021 = vmatprep.subr.mxu0 0.0
  %1022 = vmatpush1.msra.mxu0 0.0
  %1023 = vmatprep.subr.mxu0 0.0
  %1024 = vmatpush1.msra.mxu0 0.0
  %1025 = vmatprep.subr.mxu0 0.0
  %1026 = vmatpush1.msra.mxu0 0.0
  %1027 = vmatprep.subr.mxu0 0.0
  %1028 = vmatpush1.msra.mxu0 0.0
  %1029 = vmatprep.subr.mxu0 0.0
  %1030 = vmatpush1.msra.mxu0 0.0
  %1031 = vmatprep.subr.mxu0 0.0
  %1032 = vmatpush1.msra.mxu0 0.0
  %1033 = vmatprep.subr.mxu0 0.0
  %1034 = vmatpush1.msra.mxu0 0.0
  %1035 = vmatprep.subr.mxu0 0.0
  %1036 = vmatpush1.msra.mxu0 0.0
  %1037 = vmatprep.subr.mxu0 0.0
  %1038 = vmatpush1.msra.mxu0 0.0
  %1039 = vmatprep.subr.mxu0 0.0
  %1040 = vmatpush1.msra.mxu0 0.0
  %1041 = vmatprep.subr.mxu0 0.0
  %1042 = vmatpush1.msra.mxu0 0.0
  %1043 = vmatprep.subr.mxu0 0.0
  %1044 = vmatpush1.msra.mxu0 0.0
  %1045 = vmatprep.subr.mxu0 0.0
  %1046 = vmatpush1.msra.mxu0 0.0
  %1047 = vmatprep.mubr.f32.mxu0 0.0
  %1048 = vmatmul.mubr.f32.gmra.mrb[0].mxu0 %v981
  %v1049 = vpop.f32.mrb[0].mxu0
  %v1050 = vadd.f32 0.0, %v1049
  %v1051 = vpop.f32.mrb[0].mxu0
  %1052 = vdwg.mxu0
  %v1053 = vadd.f32 %v127, %v1050
  %v1054 = vxor.u32 %v1053, 2147483648
  %v1055 = vmul.f32 %v1054, 1.442695
  %v1056 = vpow.pop %v1055
  %v1057 = vadd.f32 %v1056, 1.0
  %v1058 = vrcp.pop %v1057
  %v1059 = vmul.f32 1.0, %v1058
  %v1060 = vtanh.pop %v1053
  %v1062 = vrot.slane %v863, 6
  %v1064 = vmul.f32 %v1059, %v1062
  %1066 = vrot.lane.b32.xlu0 %v1060, 104
  %v1067 = vpop.permute.xlu0 %1066
  %v1069 = vmul.f32 %v1059, %v1067
  %1071 = vrot.lane.b32.xlu0 %v1069, 8
  %v1072 = vpop.permute.xlu0 %1071
  %v1074 = vadd.f32 %v1064, %v1072
  %v1075 = vtanh.pop %v1074
  %1077 = vrot.lane.b32.xlu0 %v1075, 8
  %v1078 = vpop.permute.xlu0 %1077
  %v1080 = vmul.f32 %v1059, %v1078
  %1082 = vrot.lane.b32.xlu0 %v1080, 112
  %v1083 = vpop.permute.xlu0 %1082
  %1086 = vrot.lane.b32.xlu0 %v977, 120
  %v1087 = vpop.permute.xlu0 %1086
  %v1089 = vsel %vm137, %v1083, %v1087
  %v1091 = vsel %vm241, %v1089, 0
  %1093 = vmatprep.subr.mxu0 0.0
  %1094 = vmatpush1.msra.mxu0 %v32
  %1095 = vmatprep.subr.mxu0 0.0
  %1096 = vmatpush1.msra.mxu0 %v33
  %1097 = vmatprep.subr.mxu0 0.0
  %1098 = vmatpush1.msra.mxu0 0.0
  %1099 = vmatprep.subr.mxu0 0.0
  %1100 = vmatpush1.msra.mxu0 0.0
  %1101 = vmatprep.subr.mxu0 0.0
  %1102 = vmatpush1.msra.mxu0 0.0
  %1103 = vmatprep.subr.mxu0 0.0
  %1104 = vmatpush1.msra.mxu0 0.0
  %1105 = vmatprep.subr.mxu0 0.0
  %1106 = vmatpush1.msra.mxu0 0.0
  %1107 = vmatprep.subr.mxu0 0.0
  %1108 = vmatpush1.msra.mxu0 0.0
  %1109 = vmatprep.subr.mxu0 0.0
  %1110 = vmatpush1.msra.mxu0 0.0
  %1111 = vmatprep.subr.mxu0 0.0
  %1112 = vmatpush1.msra.mxu0 0.0
  %1113 = vmatprep.subr.mxu0 0.0
  %1114 = vmatpush1.msra.mxu0 0.0
  %1115 = vmatprep.subr.mxu0 0.0
  %1116 = vmatpush1.msra.mxu0 0.0
  %1117 = vmatprep.subr.mxu0 0.0
  %1118 = vmatpush1.msra.mxu0 0.0
  %1119 = vmatprep.subr.mxu0 0.0
  %1120 = vmatpush1.msra.mxu0 0.0
  %1121 = vmatprep.subr.mxu0 0.0
  %1122 = vmatpush1.msra.mxu0 0.0
  %1123 = vmatprep.subr.mxu0 0.0
  %1124 = vmatpush1.msra.mxu0 0.0
  %1125 = vmatprep.subr.mxu0 0.0
  %1126 = vmatpush1.msra.mxu0 0.0
  %1127 = vmatprep.subr.mxu0 0.0
  %1128 = vmatpush1.msra.mxu0 0.0
  %1129 = vmatprep.subr.mxu0 0.0
  %1130 = vmatpush1.msra.mxu0 0.0
  %1131 = vmatprep.subr.mxu0 0.0
  %1132 = vmatpush1.msra.mxu0 0.0
  %1133 = vmatprep.subr.mxu0 0.0
  %1134 = vmatpush1.msra.mxu0 0.0
  %1135 = vmatprep.subr.mxu0 0.0
  %1136 = vmatpush1.msra.mxu0 0.0
  %1137 = vmatprep.subr.mxu0 0.0
  %1138 = vmatpush1.msra.mxu0 0.0
  %1139 = vmatprep.subr.mxu0 0.0
  %1140 = vmatpush1.msra.mxu0 0.0
  %1141 = vmatprep.subr.mxu0 0.0
  %1142 = vmatpush1.msra.mxu0 0.0
  %1143 = vmatprep.subr.mxu0 0.0
  %1144 = vmatpush1.msra.mxu0 0.0
  %1145 = vmatprep.subr.mxu0 0.0
  %1146 = vmatpush1.msra.mxu0 0.0
  %1147 = vmatprep.subr.mxu0 0.0
  %1148 = vmatpush1.msra.mxu0 0.0
  %1149 = vmatprep.subr.mxu0 0.0
  %1150 = vmatpush1.msra.mxu0 0.0
  %1151 = vmatprep.subr.mxu0 0.0
  %1152 = vmatpush1.msra.mxu0 0.0
  %1153 = vmatprep.subr.mxu0 0.0
  %1154 = vmatpush1.msra.mxu0 0.0
  %1155 = vmatprep.subr.mxu0 0.0
  %1156 = vmatpush1.msra.mxu0 0.0
  %1157 = vmatprep.mubr.f32.mxu0 0.0
  %1158 = vmatmul.mubr.f32.gmra.mrb[0].mxu0 %v1091
  %v1159 = vpop.f32.mrb[0].mxu0
  %v1160 = vadd.f32 %v135, %v1159
  %v1161 = vpop.f32.mrb[0].mxu0
  %1162 = vdwg.mxu0
  %v1163 = vxor.u32 %v1160, 2147483648
  %v1164 = vmul.f32 %v1163, 1.442695
  %v1165 = vpow.pop %v1164
  %v1166 = vadd.f32 %v1165, 1.0
  %v1167 = vrcp.pop %v1166
  %v1168 = vmul.f32 1.0, %v1167
  %v1169 = vtanh.pop %v1160
  %v1170 = vmul.f32 %v1168, %v971
  %1172 = vrot.lane.b32.xlu0 %v1169, 104
  %v1173 = vpop.permute.xlu0 %1172
  %v1175 = vmul.f32 %v1168, %v1173
  %1177 = vrot.lane.b32.xlu0 %v1175, 8
  %v1178 = vpop.permute.xlu0 %1177
  %v1180 = vadd.f32 %v1170, %v1178
  %v1181 = vtanh.pop %v1180
  %1183 = vrot.lane.b32.xlu0 %v1181, 8
  %v1184 = vpop.permute.xlu0 %1183
  %v1186 = vmul.f32 %v1168, %v1184
  %v1187 = vsel %vm137, %v1083, 0
  %1189 = vmatprep.subr.mxu0 0.0
  %1190 = vmatpush1.msra.mxu0 %v31
  %1191 = vmatprep.subr.mxu0 0.0
  %1192 = vmatpush1.msra.mxu0 0.0
  %1193 = vmatprep.subr.mxu0 0.0
  %1194 = vmatpush1.msra.mxu0 0.0
  %1195 = vmatprep.subr.mxu0 0.0
  %1196 = vmatpush1.msra.mxu0 0.0
  %1197 = vmatprep.subr.mxu0 0.0
  %1198 = vmatpush1.msra.mxu0 0.0
  %1199 = vmatprep.subr.mxu0 0.0
  %1200 = vmatpush1.msra.mxu0 0.0
  %1201 = vmatprep.subr.mxu0 0.0
  %1202 = vmatpush1.msra.mxu0 0.0
  %1203 = vmatprep.subr.mxu0 0.0
  %1204 = vmatpush1.msra.mxu0 0.0
  %1205 = vmatprep.subr.mxu0 0.0
  %1206 = vmatpush1.msra.mxu0 0.0
  %1207 = vmatprep.subr.mxu0 0.0
  %1208 = vmatpush1.msra.mxu0 0.0
  %1209 = vmatprep.subr.mxu0 0.0
  %1210 = vmatpush1.msra.mxu0 0.0
  %1211 = vmatprep.subr.mxu0 0.0
  %1212 = vmatpush1.msra.mxu0 0.0
  %1213 = vmatprep.subr.mxu0 0.0
  %1214 = vmatpush1.msra.mxu0 0.0
  %1215 = vmatprep.subr.mxu0 0.0
  %1216 = vmatpush1.msra.mxu0 0.0
  %1217 = vmatprep.subr.mxu0 0.0
  %1218 = vmatpush1.msra.mxu0 0.0
  %1219 = vmatprep.subr.mxu0 0.0
  %1220 = vmatpush1.msra.mxu0 0.0
  %1221 = vmatprep.subr.mxu0 0.0
  %1222 = vmatpush1.msra.mxu0 0.0
  %1223 = vmatprep.subr.mxu0 0.0
  %1224 = vmatpush1.msra.mxu0 0.0
  %1225 = vmatprep.subr.mxu0 0.0
  %1226 = vmatpush1.msra.mxu0 0.0
  %1227 = vmatprep.subr.mxu0 0.0
  %1228 = vmatpush1.msra.mxu0 0.0
  %1229 = vmatprep.subr.mxu0 0.0
  %1230 = vmatpush1.msra.mxu0 0.0
  %1231 = vmatprep.subr.mxu0 0.0
  %1232 = vmatpush1.msra.mxu0 0.0
  %1233 = vmatprep.subr.mxu0 0.0
  %1234 = vmatpush1.msra.mxu0 0.0
  %1235 = vmatprep.subr.mxu0 0.0
  %1236 = vmatpush1.msra.mxu0 0.0
  %1237 = vmatprep.subr.mxu0 0.0
  %1238 = vmatpush1.msra.mxu0 0.0
  %1239 = vmatprep.subr.mxu0 0.0
  %1240 = vmatpush1.msra.mxu0 0.0
  %1241 = vmatprep.subr.mxu0 0.0
  %1242 = vmatpush1.msra.mxu0 0.0
  %1243 = vmatprep.subr.mxu0 0.0
  %1244 = vmatpush1.msra.mxu0 0.0
  %1245 = vmatprep.subr.mxu0 0.0
  %1246 = vmatpush1.msra.mxu0 0.0
  %1247 = vmatprep.subr.mxu0 0.0
  %1248 = vmatpush1.msra.mxu0 0.0
  %1249 = vmatprep.subr.mxu0 0.0
  %1250 = vmatpush1.msra.mxu0 0.0
  %1251 = vmatprep.subr.mxu0 0.0
  %1252 = vmatpush1.msra.mxu0 0.0
  %1253 = vmatprep.mubr.f32.mxu0 0.0
  %1254 = vmatmul.mubr.f32.gmra.mrb[0].mxu0 %v1187
  %v1255 = vpop.f32.mrb[0].mxu0
  %v1256 = vadd.f32 0.0, %v1255
  %v1257 = vpop.f32.mrb[0].mxu0
  %1258 = vdwg.mxu0
  %v1260 = vrot.slane %v1256, 6
  %v1262 = vadd.f32 %v127, %v1260
  %v1263 = vxor.u32 %v1262, 2147483648
  %v1264 = vmul.f32 %v1263, 1.442695
  %v1265 = vpow.pop %v1264
  %v1266 = vadd.f32 %v1265, 1.0
  %v1267 = vrcp.pop %v1266
  %v1268 = vmul.f32 1.0, %v1267
  %v1269 = vtanh.pop %v1262
  %v1271 = vrot.slane %v1074, 6
  %v1273 = vmul.f32 %v1268, %v1271
  %1275 = vrot.lane.b32.xlu0 %v1269, 104
  %v1276 = vpop.permute.xlu0 %1275
  %v1278 = vmul.f32 %v1268, %v1276
  %1280 = vrot.lane.b32.xlu0 %v1278, 8
  %v1281 = vpop.permute.xlu0 %1280
  %v1283 = vadd.f32 %v1273, %v1281
  %v1284 = vtanh.pop %v1283
  %1286 = vrot.lane.b32.xlu0 %v1284, 8
  %v1287 = vpop.permute.xlu0 %1286
  %v1289 = vmul.f32 %v1268, %v1287
  %1291 = vrot.lane.b32.xlu0 %v1289, 112
  %v1292 = vpop.permute.xlu0 %1291
  %v1295 = vrot.slane %v1186, 6
  %1296 = vrot.lane.b32.xlu0 %v1295, 120
  %v1297 = vpop.permute.xlu0 %1296
  %v1299 = vsel %vm137, %v1292, %v1297
  %v1301 = vrot.slane %v1299, 2
  %v1302 = vsel %vm241, %v1301, 0
  %1304 = vmatprep.subr.mxu0 0.0
  %1305 = vmatpush1.msra.mxu0 %v32
  %1306 = vmatprep.subr.mxu0 0.0
  %1307 = vmatpush1.msra.mxu0 %v33
  %1308 = vmatprep.subr.mxu0 0.0
  %1309 = vmatpush1.msra.mxu0 0.0
  %1310 = vmatprep.subr.mxu0 0.0
  %1311 = vmatpush1.msra.mxu0 0.0
  %1312 = vmatprep.subr.mxu0 0.0
  %1313 = vmatpush1.msra.mxu0 0.0
  %1314 = vmatprep.subr.mxu0 0.0
  %1315 = vmatpush1.msra.mxu0 0.0
  %1316 = vmatprep.subr.mxu0 0.0
  %1317 = vmatpush1.msra.mxu0 0.0
  %1318 = vmatprep.subr.mxu0 0.0
  %1319 = vmatpush1.msra.mxu0 0.0
  %1320 = vmatprep.subr.mxu0 0.0
  %1321 = vmatpush1.msra.mxu0 0.0
  %1322 = vmatprep.subr.mxu0 0.0
  %1323 = vmatpush1.msra.mxu0 0.0
  %1324 = vmatprep.subr.mxu0 0.0
  %1325 = vmatpush1.msra.mxu0 0.0
  %1326 = vmatprep.subr.mxu0 0.0
  %1327 = vmatpush1.msra.mxu0 0.0
  %1328 = vmatprep.subr.mxu0 0.0
  %1329 = vmatpush1.msra.mxu0 0.0
  %1330 = vmatprep.subr.mxu0 0.0
  %1331 = vmatpush1.msra.mxu0 0.0
  %1332 = vmatprep.subr.mxu0 0.0
  %1333 = vmatpush1.msra.mxu0 0.0
  %1334 = vmatprep.subr.mxu0 0.0
  %1335 = vmatpush1.msra.mxu0 0.0
  %1336 = vmatprep.subr.mxu0 0.0
  %1337 = vmatpush1.msra.mxu0 0.0
  %1338 = vmatprep.subr.mxu0 0.0
  %1339 = vmatpush1.msra.mxu0 0.0
  %1340 = vmatprep.subr.mxu0 0.0
  %1341 = vmatpush1.msra.mxu0 0.0
  %1342 = vmatprep.subr.mxu0 0.0
  %1343 = vmatpush1.msra.mxu0 0.0
  %1344 = vmatprep.subr.mxu0 0.0
  %1345 = vmatpush1.msra.mxu0 0.0
  %1346 = vmatprep.subr.mxu0 0.0
  %1347 = vmatpush1.msra.mxu0 0.0
  %1348 = vmatprep.subr.mxu0 0.0
  %1349 = vmatpush1.msra.mxu0 0.0
  %1350 = vmatprep.subr.mxu0 0.0
  %1351 = vmatpush1.msra.mxu0 0.0
  %1352 = vmatprep.subr.mxu0 0.0
  %1353 = vmatpush1.msra.mxu0 0.0
  %1354 = vmatprep.subr.mxu0 0.0
  %1355 = vmatpush1.msra.mxu0 0.0
  %1356 = vmatprep.subr.mxu0 0.0
  %1357 = vmatpush1.msra.mxu0 0.0
  %1358 = vmatprep.subr.mxu0 0.0
  %1359 = vmatpush1.msra.mxu0 0.0
  %1360 = vmatprep.subr.mxu0 0.0
  %1361 = vmatpush1.msra.mxu0 0.0
  %1362 = vmatprep.subr.mxu0 0.0
  %1363 = vmatpush1.msra.mxu0 0.0
  %1364 = vmatprep.subr.mxu0 0.0
  %1365 = vmatpush1.msra.mxu0 0.0
  %1366 = vmatprep.subr.mxu0 0.0
  %1367 = vmatpush1.msra.mxu0 0.0
  %1368 = vmatprep.mubr.f32.mxu0 0.0
  %1369 = vmatmul.mubr.f32.gmra.mrb[0].mxu0 %v1302
  %v1370 = vpop.f32.mrb[0].mxu0
  %v1371 = vadd.f32 %v135, %v1370
  %v1372 = vpop.f32.mrb[0].mxu0
  %1373 = vdwg.mxu0
  %v1374 = vxor.u32 %v1371, 2147483648
  %v1375 = vmul.f32 %v1374, 1.442695
  %v1376 = vpow.pop %v1375
  %v1377 = vadd.f32 %v1376, 1.0
  %v1378 = vrcp.pop %v1377
  %v1379 = vmul.f32 1.0, %v1378
  %v1380 = vtanh.pop %v1371
  %v1381 = vmul.f32 %v1379, %v1180
  %1383 = vrot.lane.b32.xlu0 %v1380, 104
  %v1384 = vpop.permute.xlu0 %1383
  %v1386 = vmul.f32 %v1379, %v1384
  %1388 = vrot.lane.b32.xlu0 %v1386, 8
  %v1389 = vpop.permute.xlu0 %1388
  %v1391 = vadd.f32 %v1381, %v1389
  %v1392 = vtanh.pop %v1391
  %1394 = vrot.lane.b32.xlu0 %v1392, 8
  %v1395 = vpop.permute.xlu0 %1394
  %v1397 = vmul.f32 %v1379, %v1395
  %v1398 = vrot.slane %v1289, 2
  %1399 = vrot.lane.b32.xlu0 %v1398, 112
  %v1400 = vpop.permute.xlu0 %1399
  %v1401 = vsel %vm137, %v1400, 0
  %1403 = vmatprep.subr.mxu0 0.0
  %1404 = vmatpush1.msra.mxu0 %v31
  %1405 = vmatprep.subr.mxu0 0.0
  %1406 = vmatpush1.msra.mxu0 0.0
  %1407 = vmatprep.subr.mxu0 0.0
  %1408 = vmatpush1.msra.mxu0 0.0
  %1409 = vmatprep.subr.mxu0 0.0
  %1410 = vmatpush1.msra.mxu0 0.0
  %1411 = vmatprep.subr.mxu0 0.0
  %1412 = vmatpush1.msra.mxu0 0.0
  %1413 = vmatprep.subr.mxu0 0.0
  %1414 = vmatpush1.msra.mxu0 0.0
  %1415 = vmatprep.subr.mxu0 0.0
  %1416 = vmatpush1.msra.mxu0 0.0
  %1417 = vmatprep.subr.mxu0 0.0
  %1418 = vmatpush1.msra.mxu0 0.0
  %1419 = vmatprep.subr.mxu0 0.0
  %1420 = vmatpush1.msra.mxu0 0.0
  %1421 = vmatprep.subr.mxu0 0.0
  %1422 = vmatpush1.msra.mxu0 0.0
  %1423 = vmatprep.subr.mxu0 0.0
  %1424 = vmatpush1.msra.mxu0 0.0
  %1425 = vmatprep.subr.mxu0 0.0
  %1426 = vmatpush1.msra.mxu0 0.0
  %1427 = vmatprep.subr.mxu0 0.0
  %1428 = vmatpush1.msra.mxu0 0.0
  %1429 = vmatprep.subr.mxu0 0.0
  %1430 = vmatpush1.msra.mxu0 0.0
  %1431 = vmatprep.subr.mxu0 0.0
  %1432 = vmatpush1.msra.mxu0 0.0
  %1433 = vmatprep.subr.mxu0 0.0
  %1434 = vmatpush1.msra.mxu0 0.0
  %1435 = vmatprep.subr.mxu0 0.0
  %1436 = vmatpush1.msra.mxu0 0.0
  %1437 = vmatprep.subr.mxu0 0.0
  %1438 = vmatpush1.msra.mxu0 0.0
  %1439 = vmatprep.subr.mxu0 0.0
  %1440 = vmatpush1.msra.mxu0 0.0
  %1441 = vmatprep.subr.mxu0 0.0
  %1442 = vmatpush1.msra.mxu0 0.0
  %1443 = vmatprep.subr.mxu0 0.0
  %1444 = vmatpush1.msra.mxu0 0.0
  %1445 = vmatprep.subr.mxu0 0.0
  %1446 = vmatpush1.msra.mxu0 0.0
  %1447 = vmatprep.subr.mxu0 0.0
  %1448 = vmatpush1.msra.mxu0 0.0
  %1449 = vmatprep.subr.mxu0 0.0
  %1450 = vmatpush1.msra.mxu0 0.0
  %1451 = vmatprep.subr.mxu0 0.0
  %1452 = vmatpush1.msra.mxu0 0.0
  %1453 = vmatprep.subr.mxu0 0.0
  %1454 = vmatpush1.msra.mxu0 0.0
  %1455 = vmatprep.subr.mxu0 0.0
  %1456 = vmatpush1.msra.mxu0 0.0
  %1457 = vmatprep.subr.mxu0 0.0
  %1458 = vmatpush1.msra.mxu0 0.0
  %1459 = vmatprep.subr.mxu0 0.0
  %1460 = vmatpush1.msra.mxu0 0.0
  %1461 = vmatprep.subr.mxu0 0.0
  %1462 = vmatpush1.msra.mxu0 0.0
  %1463 = vmatprep.subr.mxu0 0.0
  %1464 = vmatpush1.msra.mxu0 0.0
  %1465 = vmatprep.subr.mxu0 0.0
  %1466 = vmatpush1.msra.mxu0 0.0
  %1467 = vmatprep.mubr.f32.mxu0 0.0
  %1468 = vmatmul.mubr.f32.gmra.mrb[0].mxu0 %v1401
  %v1469 = vpop.f32.mrb[0].mxu0
  %v1470 = vadd.f32 0.0, %v1469
  %v1471 = vpop.f32.mrb[0].mxu0
  %1472 = vdwg.mxu0
  %v1474 = vrot.slane %v1470, 4
  %v1476 = vadd.f32 %v127, %v1474
  %v1477 = vxor.u32 %v1476, 2147483648
  %v1478 = vmul.f32 %v1477, 1.442695
  %v1479 = vpow.pop %v1478
  %v1480 = vadd.f32 %v1479, 1.0
  %v1481 = vrcp.pop %v1480
  %v1482 = vmul.f32 1.0, %v1481
  %v1483 = vtanh.pop %v1476
  %v1485 = vrot.slane %v1283, 6
  %v1487 = vmul.f32 %v1482, %v1485
  %1489 = vrot.lane.b32.xlu0 %v1483, 104
  %v1490 = vpop.permute.xlu0 %1489
  %v1492 = vmul.f32 %v1482, %v1490
  %1494 = vrot.lane.b32.xlu0 %v1492, 8
  %v1495 = vpop.permute.xlu0 %1494
  %v1497 = vadd.f32 %v1487, %v1495
  %v1498 = vtanh.pop %v1497
  %1500 = vrot.lane.b32.xlu0 %v1498, 8
  %v1501 = vpop.permute.xlu0 %1500
  %v1503 = vmul.f32 %v1482, %v1501
  %1505 = vrot.lane.b32.xlu0 %v1503, 112
  %v1506 = vpop.permute.xlu0 %1505
  %v1509 = vrot.slane %v1397, 4
  %1510 = vrot.lane.b32.xlu0 %v1509, 120
  %v1511 = vpop.permute.xlu0 %1510
  %v1513 = vsel %vm137, %v1506, %v1511
  %v1515 = vrot.slane %v1513, 4
  %v1516 = vsel %vm241, %v1515, 0
  %1518 = vmatprep.subr.mxu0 0.0
  %1519 = vmatpush1.msra.mxu0 %v32
  %1520 = vmatprep.subr.mxu0 0.0
  %1521 = vmatpush1.msra.mxu0 %v33
  %1522 = vmatprep.subr.mxu0 0.0
  %1523 = vmatpush1.msra.mxu0 0.0
  %1524 = vmatprep.subr.mxu0 0.0
  %1525 = vmatpush1.msra.mxu0 0.0
  %1526 = vmatprep.subr.mxu0 0.0
  %1527 = vmatpush1.msra.mxu0 0.0
  %1528 = vmatprep.subr.mxu0 0.0
  %1529 = vmatpush1.msra.mxu0 0.0
  %1530 = vmatprep.subr.mxu0 0.0
  %1531 = vmatpush1.msra.mxu0 0.0
  %1532 = vmatprep.subr.mxu0 0.0
  %1533 = vmatpush1.msra.mxu0 0.0
  %1534 = vmatprep.subr.mxu0 0.0
  %1535 = vmatpush1.msra.mxu0 0.0
  %1536 = vmatprep.subr.mxu0 0.0
  %1537 = vmatpush1.msra.mxu0 0.0
  %1538 = vmatprep.subr.mxu0 0.0
  %1539 = vmatpush1.msra.mxu0 0.0
  %1540 = vmatprep.subr.mxu0 0.0
  %1541 = vmatpush1.msra.mxu0 0.0
  %1542 = vmatprep.subr.mxu0 0.0
  %1543 = vmatpush1.msra.mxu0 0.0
  %1544 = vmatprep.subr.mxu0 0.0
  %1545 = vmatpush1.msra.mxu0 0.0
  %1546 = vmatprep.subr.mxu0 0.0
  %1547 = vmatpush1.msra.mxu0 0.0
  %1548 = vmatprep.subr.mxu0 0.0
  %1549 = vmatpush1.msra.mxu0 0.0
  %1550 = vmatprep.subr.mxu0 0.0
  %1551 = vmatpush1.msra.mxu0 0.0
  %1552 = vmatprep.subr.mxu0 0.0
  %1553 = vmatpush1.msra.mxu0 0.0
  %1554 = vmatprep.subr.mxu0 0.0
  %1555 = vmatpush1.msra.mxu0 0.0
  %1556 = vmatprep.subr.mxu0 0.0
  %1557 = vmatpush1.msra.mxu0 0.0
  %1558 = vmatprep.subr.mxu0 0.0
  %1559 = vmatpush1.msra.mxu0 0.0
  %1560 = vmatprep.subr.mxu0 0.0
  %1561 = vmatpush1.msra.mxu0 0.0
  %1562 = vmatprep.subr.mxu0 0.0
  %1563 = vmatpush1.msra.mxu0 0.0
  %1564 = vmatprep.subr.mxu0 0.0
  %1565 = vmatpush1.msra.mxu0 0.0
  %1566 = vmatprep.subr.mxu0 0.0
  %1567 = vmatpush1.msra.mxu0 0.0
  %1568 = vmatprep.subr.mxu0 0.0
  %1569 = vmatpush1.msra.mxu0 0.0
  %1570 = vmatprep.subr.mxu0 0.0
  %1571 = vmatpush1.msra.mxu0 0.0
  %1572 = vmatprep.subr.mxu0 0.0
  %1573 = vmatpush1.msra.mxu0 0.0
  %1574 = vmatprep.subr.mxu0 0.0
  %1575 = vmatpush1.msra.mxu0 0.0
  %1576 = vmatprep.subr.mxu0 0.0
  %1577 = vmatpush1.msra.mxu0 0.0
  %1578 = vmatprep.subr.mxu0 0.0
  %1579 = vmatpush1.msra.mxu0 0.0
  %1580 = vmatprep.subr.mxu0 0.0
  %1581 = vmatpush1.msra.mxu0 0.0
  %1582 = vmatprep.mubr.f32.mxu0 0.0
  %1583 = vmatmul.mubr.f32.gmra.mrb[0].mxu0 %v1516
  %v1584 = vpop.f32.mrb[0].mxu0
  %v1585 = vadd.f32 %v135, %v1584
  %v1586 = vpop.f32.mrb[0].mxu0
  %1587 = vdwg.mxu0
  %v1588 = vxor.u32 %v1585, 2147483648
  %v1589 = vmul.f32 %v1588, 1.442695
  %v1590 = vpow.pop %v1589
  %v1591 = vadd.f32 %v1590, 1.0
  %v1592 = vrcp.pop %v1591
  %v1593 = vmul.f32 1.0, %v1592
  %v1594 = vtanh.pop %v1585
  %v1595 = vmul.f32 %v1593, %v1391
  %1597 = vrot.lane.b32.xlu0 %v1594, 104
  %v1598 = vpop.permute.xlu0 %1597
  %v1600 = vmul.f32 %v1593, %v1598
  %1602 = vrot.lane.b32.xlu0 %v1600, 8
  %v1603 = vpop.permute.xlu0 %1602
  %v1605 = vadd.f32 %v1595, %v1603
  %v1606 = vtanh.pop %v1605
  %1608 = vrot.lane.b32.xlu0 %v1606, 8
  %v1609 = vpop.permute.xlu0 %1608
  %v1611 = vmul.f32 %v1593, %v1609
  %v1612 = vrot.slane %v1503, 4
  %1613 = vrot.lane.b32.xlu0 %v1612, 112
  %v1614 = vpop.permute.xlu0 %1613
  %v1615 = vsel %vm137, %v1614, 0
  %1617 = vmatprep.subr.mxu0 0.0
  %1618 = vmatpush1.msra.mxu0 %v31
  %1619 = vmatprep.subr.mxu0 0.0
  %1620 = vmatpush1.msra.mxu0 0.0
  %1621 = vmatprep.subr.mxu0 0.0
  %1622 = vmatpush1.msra.mxu0 0.0
  %1623 = vmatprep.subr.mxu0 0.0
  %1624 = vmatpush1.msra.mxu0 0.0
  %1625 = vmatprep.subr.mxu0 0.0
  %1626 = vmatpush1.msra.mxu0 0.0
  %1627 = vmatprep.subr.mxu0 0.0
  %1628 = vmatpush1.msra.mxu0 0.0
  %1629 = vmatprep.subr.mxu0 0.0
  %1630 = vmatpush1.msra.mxu0 0.0
  %1631 = vmatprep.subr.mxu0 0.0
  %1632 = vmatpush1.msra.mxu0 0.0
  %1633 = vmatprep.subr.mxu0 0.0
  %1634 = vmatpush1.msra.mxu0 0.0
  %1635 = vmatprep.subr.mxu0 0.0
  %1636 = vmatpush1.msra.mxu0 0.0
  %1637 = vmatprep.subr.mxu0 0.0
  %1638 = vmatpush1.msra.mxu0 0.0
  %1639 = vmatprep.subr.mxu0 0.0
  %1640 = vmatpush1.msra.mxu0 0.0
  %1641 = vmatprep.subr.mxu0 0.0
  %1642 = vmatpush1.msra.mxu0 0.0
  %1643 = vmatprep.subr.mxu0 0.0
  %1644 = vmatpush1.msra.mxu0 0.0
  %1645 = vmatprep.subr.mxu0 0.0
  %1646 = vmatpush1.msra.mxu0 0.0
  %1647 = vmatprep.subr.mxu0 0.0
  %1648 = vmatpush1.msra.mxu0 0.0
  %1649 = vmatprep.subr.mxu0 0.0
  %1650 = vmatpush1.msra.mxu0 0.0
  %1651 = vmatprep.subr.mxu0 0.0
  %1652 = vmatpush1.msra.mxu0 0.0
  %1653 = vmatprep.subr.mxu0 0.0
  %1654 = vmatpush1.msra.mxu0 0.0
  %1655 = vmatprep.subr.mxu0 0.0
  %1656 = vmatpush1.msra.mxu0 0.0
  %1657 = vmatprep.subr.mxu0 0.0
  %1658 = vmatpush1.msra.mxu0 0.0
  %1659 = vmatprep.subr.mxu0 0.0
  %1660 = vmatpush1.msra.mxu0 0.0
  %1661 = vmatprep.subr.mxu0 0.0
  %1662 = vmatpush1.msra.mxu0 0.0
  %1663 = vmatprep.subr.mxu0 0.0
  %1664 = vmatpush1.msra.mxu0 0.0
  %1665 = vmatprep.subr.mxu0 0.0
  %1666 = vmatpush1.msra.mxu0 0.0
  %1667 = vmatprep.subr.mxu0 0.0
  %1668 = vmatpush1.msra.mxu0 0.0
  %1669 = vmatprep.subr.mxu0 0.0
  %1670 = vmatpush1.msra.mxu0 0.0
  %1671 = vmatprep.subr.mxu0 0.0
  %1672 = vmatpush1.msra.mxu0 0.0
  %1673 = vmatprep.subr.mxu0 0.0
  %1674 = vmatpush1.msra.mxu0 0.0
  %1675 = vmatprep.subr.mxu0 0.0
  %1676 = vmatpush1.msra.mxu0 0.0
  %1677 = vmatprep.subr.mxu0 0.0
  %1678 = vmatpush1.msra.mxu0 0.0
  %1679 = vmatprep.subr.mxu0 0.0
  %1680 = vmatpush1.msra.mxu0 0.0
  %1681 = vmatprep.mubr.f32.mxu0 0.0
  %1682 = vmatmul.mubr.f32.gmra.mrb[0].mxu0 %v1615
  %v1683 = vpop.f32.mrb[0].mxu0
  %v1684 = vadd.f32 0.0, %v1683
  %v1685 = vpop.f32.mrb[0].mxu0
  %1686 = vdwg.mxu0
  %v1688 = vrot.slane %v1684, 2
  %v1690 = vadd.f32 %v127, %v1688
  %v1691 = vxor.u32 %v1690, 2147483648
  %v1692 = vmul.f32 %v1691, 1.442695
  %v1693 = vpow.pop %v1692
  %v1694 = vadd.f32 %v1693, 1.0
  %v1695 = vrcp.pop %v1694
  %v1696 = vmul.f32 1.0, %v1695
  %v1697 = vtanh.pop %v1690
  %v1699 = vrot.slane %v1497, 6
  %v1701 = vmul.f32 %v1696, %v1699
  %1703 = vrot.lane.b32.xlu0 %v1697, 104
  %v1704 = vpop.permute.xlu0 %1703
  %v1706 = vmul.f32 %v1696, %v1704
  %1708 = vrot.lane.b32.xlu0 %v1706, 8
  %v1709 = vpop.permute.xlu0 %1708
  %v1711 = vadd.f32 %v1701, %v1709
  %v1712 = vtanh.pop %v1711
  %1714 = vrot.lane.b32.xlu0 %v1712, 8
  %v1715 = vpop.permute.xlu0 %1714
  %v1717 = vmul.f32 %v1696, %v1715
  %1719 = vrot.lane.b32.xlu0 %v1717, 112
  %v1720 = vpop.permute.xlu0 %1719
  %v1723 = vrot.slane %v1611, 2
  %1724 = vrot.lane.b32.xlu0 %v1723, 120
  %v1725 = vpop.permute.xlu0 %1724
  %v1727 = vsel %vm137, %v1720, %v1725
  %v1729 = vrot.slane %v1727, 6
  %v1730 = vsel %vm241, %v1729, 0
  %1732 = vmatprep.subr.mxu0 0.0
  %1733 = vmatpush1.msra.mxu0 %v32
  %1734 = vmatprep.subr.mxu0 0.0
  %1735 = vmatpush1.msra.mxu0 %v33
  %1736 = vmatprep.subr.mxu0 0.0
  %1737 = vmatpush1.msra.mxu0 0.0
  %1738 = vmatprep.subr.mxu0 0.0
  %1739 = vmatpush1.msra.mxu0 0.0
  %1740 = vmatprep.subr.mxu0 0.0
  %1741 = vmatpush1.msra.mxu0 0.0
  %1742 = vmatprep.subr.mxu0 0.0
  %1743 = vmatpush1.msra.mxu0 0.0
  %1744 = vmatprep.subr.mxu0 0.0
  %1745 = vmatpush1.msra.mxu0 0.0
  %1746 = vmatprep.subr.mxu0 0.0
  %1747 = vmatpush1.msra.mxu0 0.0
  %1748 = vmatprep.subr.mxu0 0.0
  %1749 = vmatpush1.msra.mxu0 0.0
  %1750 = vmatprep.subr.mxu0 0.0
  %1751 = vmatpush1.msra.mxu0 0.0
  %1752 = vmatprep.subr.mxu0 0.0
  %1753 = vmatpush1.msra.mxu0 0.0
  %1754 = vmatprep.subr.mxu0 0.0
  %1755 = vmatpush1.msra.mxu0 0.0
  %1756 = vmatprep.subr.mxu0 0.0
  %1757 = vmatpush1.msra.mxu0 0.0
  %1758 = vmatprep.subr.mxu0 0.0
  %1759 = vmatpush1.msra.mxu0 0.0
  %1760 = vmatprep.subr.mxu0 0.0
  %1761 = vmatpush1.msra.mxu0 0.0
  %1762 = vmatprep.subr.mxu0 0.0
  %1763 = vmatpush1.msra.mxu0 0.0
  %1764 = vmatprep.subr.mxu0 0.0
  %1765 = vmatpush1.msra.mxu0 0.0
  %1766 = vmatprep.subr.mxu0 0.0
  %1767 = vmatpush1.msra.mxu0 0.0
  %1768 = vmatprep.subr.mxu0 0.0
  %1769 = vmatpush1.msra.mxu0 0.0
  %1770 = vmatprep.subr.mxu0 0.0
  %1771 = vmatpush1.msra.mxu0 0.0
  %1772 = vmatprep.subr.mxu0 0.0
  %1773 = vmatpush1.msra.mxu0 0.0
  %1774 = vmatprep.subr.mxu0 0.0
  %1775 = vmatpush1.msra.mxu0 0.0
  %1776 = vmatprep.subr.mxu0 0.0
  %1777 = vmatpush1.msra.mxu0 0.0
  %1778 = vmatprep.subr.mxu0 0.0
  %1779 = vmatpush1.msra.mxu0 0.0
  %1780 = vmatprep.subr.mxu0 0.0
  %1781 = vmatpush1.msra.mxu0 0.0
  %1782 = vmatprep.subr.mxu0 0.0
  %1783 = vmatpush1.msra.mxu0 0.0
  %1784 = vmatprep.subr.mxu0 0.0
  %1785 = vmatpush1.msra.mxu0 0.0
  %1786 = vmatprep.subr.mxu0 0.0
  %1787 = vmatpush1.msra.mxu0 0.0
  %1788 = vmatprep.subr.mxu0 0.0
  %1789 = vmatpush1.msra.mxu0 0.0
  %1790 = vmatprep.subr.mxu0 0.0
  %1791 = vmatpush1.msra.mxu0 0.0
  %1792 = vmatprep.subr.mxu0 0.0
  %1793 = vmatpush1.msra.mxu0 0.0
  %1794 = vmatprep.subr.mxu0 0.0
  %1795 = vmatpush1.msra.mxu0 0.0
  %1796 = vmatprep.mubr.f32.mxu0 0.0
  %1797 = vmatmul.mubr.f32.gmra.mrb[0].mxu0 %v1730
  %v1798 = vpop.f32.mrb[0].mxu0
  %v1799 = vadd.f32 %v135, %v1798
  %v1800 = vpop.f32.mrb[0].mxu0
  %1801 = vdwg.mxu0
  %v1802 = vxor.u32 %v1799, 2147483648
  %v1803 = vmul.f32 %v1802, 1.442695
  %v1804 = vpow.pop %v1803
  %v1805 = vadd.f32 %v1804, 1.0
  %v1806 = vrcp.pop %v1805
  %v1807 = vmul.f32 1.0, %v1806
  %v1808 = vtanh.pop %v1799
  %v1809 = vmul.f32 %v1807, %v1605
  %1811 = vrot.lane.b32.xlu0 %v1808, 104
  %v1812 = vpop.permute.xlu0 %1811
  %v1814 = vmul.f32 %v1807, %v1812
  %1816 = vrot.lane.b32.xlu0 %v1814, 8
  %v1817 = vpop.permute.xlu0 %1816
  %v1819 = vadd.f32 %v1809, %v1817
  %v1820 = vtanh.pop %v1819
  %1822 = vrot.lane.b32.xlu0 %v1820, 8
  %v1823 = vpop.permute.xlu0 %1822
  %v1825 = vmul.f32 %v1807, %v1823
  %v1826 = vmax.f32 %v1825, 0.0
  %v1827 = vld [vmem:[%s6] sm:$0xff]
  %v1828 = vld [vmem:[#allocation2] sm:$0x1]
  %v1830 = vlaneseq
  %v1831 = vshrl.u32 %v1830, 7
  %v1832 = vsub.s32 0, %v1831
  %v1833 = vrot.slane %v1828, %v1832
  %1836 = vrot.lane.b32.xlu0 %v1826, 112
  %v1837 = vpop.permute.xlu0 %1836
  %v1838 = vsel %vm137, %v1837, 0
  %1840 = vmatprep.subr.mxu0 0.0
  %1841 = vmatpush1.msra.mxu0 %v1827
  %1842 = vmatprep.subr.mxu0 0.0
  %1843 = vmatpush1.msra.mxu0 0.0
  %1844 = vmatprep.subr.mxu0 0.0
  %1845 = vmatpush1.msra.mxu0 0.0
  %1846 = vmatprep.subr.mxu0 0.0
  %1847 = vmatpush1.msra.mxu0 0.0
  %1848 = vmatprep.subr.mxu0 0.0
  %1849 = vmatpush1.msra.mxu0 0.0
  %1850 = vmatprep.subr.mxu0 0.0
  %1851 = vmatpush1.msra.mxu0 0.0
  %1852 = vmatprep.subr.mxu0 0.0
  %1853 = vmatpush1.msra.mxu0 0.0
  %1854 = vmatprep.subr.mxu0 0.0
  %1855 = vmatpush1.msra.mxu0 0.0
  %1856 = vmatprep.subr.mxu0 0.0
  %1857 = vmatpush1.msra.mxu0 0.0
  %1858 = vmatprep.subr.mxu0 0.0
  %1859 = vmatpush1.msra.mxu0 0.0
  %1860 = vmatprep.subr.mxu0 0.0
  %1861 = vmatpush1.msra.mxu0 0.0
  %1862 = vmatprep.subr.mxu0 0.0
  %1863 = vmatpush1.msra.mxu0 0.0
  %1864 = vmatprep.subr.mxu0 0.0
  %1865 = vmatpush1.msra.mxu0 0.0
  %1866 = vmatprep.subr.mxu0 0.0
  %1867 = vmatpush1.msra.mxu0 0.0
  %1868 = vmatprep.subr.mxu0 0.0
  %1869 = vmatpush1.msra.mxu0 0.0
  %1870 = vmatprep.subr.mxu0 0.0
  %1871 = vmatpush1.msra.mxu0 0.0
  %1872 = vmatprep.subr.mxu0 0.0
  %1873 = vmatpush1.msra.mxu0 0.0
  %1874 = vmatprep.subr.mxu0 0.0
  %1875 = vmatpush1.msra.mxu0 0.0
  %1876 = vmatprep.subr.mxu0 0.0
  %1877 = vmatpush1.msra.mxu0 0.0
  %1878 = vmatprep.subr.mxu0 0.0
  %1879 = vmatpush1.msra.mxu0 0.0
  %1880 = vmatprep.subr.mxu0 0.0
  %1881 = vmatpush1.msra.mxu0 0.0
  %1882 = vmatprep.subr.mxu0 0.0
  %1883 = vmatpush1.msra.mxu0 0.0
  %1884 = vmatprep.subr.mxu0 0.0
  %1885 = vmatpush1.msra.mxu0 0.0
  %1886 = vmatprep.subr.mxu0 0.0
  %1887 = vmatpush1.msra.mxu0 0.0
  %1888 = vmatprep.subr.mxu0 0.0
  %1889 = vmatpush1.msra.mxu0 0.0
  %1890 = vmatprep.subr.mxu0 0.0
  %1891 = vmatpush1.msra.mxu0 0.0
  %1892 = vmatprep.subr.mxu0 0.0
  %1893 = vmatpush1.msra.mxu0 0.0
  %1894 = vmatprep.subr.mxu0 0.0
  %1895 = vmatpush1.msra.mxu0 0.0
  %1896 = vmatprep.subr.mxu0 0.0
  %1897 = vmatpush1.msra.mxu0 0.0
  %1898 = vmatprep.subr.mxu0 0.0
  %1899 = vmatpush1.msra.mxu0 0.0
  %1900 = vmatprep.subr.mxu0 0.0
  %1901 = vmatpush1.msra.mxu0 0.0
  %1902 = vmatprep.subr.mxu0 0.0
  %1903 = vmatpush1.msra.mxu0 0.0
  %1904 = vmatprep.mubr.f32.mxu0 0.0
  %1905 = vmatmul.mubr.f32.gmra.mrb[0].mxu0 %v1838
  %v1906 = vpop.f32.mrb[0].mxu0
  %v1907 = vadd.f32 %v1833, %v1906
  %v1908 = vpop.f32.mrb[0].mxu0
  %1909 = vdwg.mxu0
  %vm1910 = vcmask 1024
  %1911 = vst.msk [vmem:[%s8] sm:$0x3] %vm1910, %v1907
  // Predicated region
  $region34: #{tpu_custom_call.1} parent=0 // pred_check
    _
  $region35: #{tpu_custom_call.1} parent=0 // pred_check_branch
    %1913 = sbr.rel (0) target = $region37
  $region36: #{tpu_custom_call.1} parent=0 // pred_region
    _
  $region37: #{tpu_custom_call.1} parent=0 // pred_fallthru
    _
  // Predicated region
  $region38: #{tpu_custom_call.1} parent=0 // pred_check
    _
  $region39: #{tpu_custom_call.1} parent=0 // pred_check_branch
    %1915 = sbr.rel (0) target = $region41
  $region40: #{tpu_custom_call.1} parent=0 // pred_region
    _
  $region41: #{tpu_custom_call.1} parent=0 // pred_fallthru
    _

</llo_original>
